<compile_context>
chip_gen: v5e
topology: v5e:2x2
jax: 0.10.0
libtpu: 0.0.40
codegen_flags: <defaults>
</compile_context>

<pallas_src>
import math

import jax
import jax.numpy as jnp
from jax.experimental import pallas as pl
from jax.experimental.pallas import tpu as pltpu

NEG_SLOPE = 0.01  # torch F.leaky_relu default


def _leaky(v):
    return jnp.where(v >= 0, v, NEG_SLOPE * v)


def rq_kernel(x_ref, h0_ref,
              w1_ref, b1_ref,
              wih_ref, bi_ref,           # fused (H, 3H) input-side gate weight / (1, 3H) bias
              whh_ref, bhn_ref,          # fused (H, 3H) recurrent gate weight / (1, H) n-bias
              w2_ref, b2_ref, wo_ref, bo_ref,
              q_ref, hfin_ref,
              gi_ref, hs_ref):
    f32 = jnp.float32
    cdt = w1_ref.dtype                    # matmul operand dtype (bf16 or f32)
    Bp, H = h0_ref.shape                  # padded batch, hidden size
    H2 = 2 * H
    H3 = 3 * H
    TBp = x_ref.shape[0]
    T = TBp // Bp                         # static sequence length

    # ---- hoisted input projection (all timesteps at once) -------------------
    # hidden_1 + leaky_relu
    a1 = _leaky(jnp.dot(x_ref[...], w1_ref[...],
                        preferred_element_type=f32) + b1_ref[...])
    a1c = a1.astype(cdt)
    # x-side GRU gate pre-activations, all three gates in ONE (T*Bp, 3H) matmul
    # (r/z recurrent biases already folded into bi).
    gi_ref[...] = jnp.dot(a1c, wih_ref[...],
                          preferred_element_type=f32) + bi_ref[...]

    whh = whh_ref[...]                    # (H, 3H), stays resident across the loop
    bhn = bhn_ref[...]                    # (1, H)

    # ---- serial GRU recurrence (gates only; one fused matmul per step) ------
    def step(t, h):
        row = pl.multiple_of(t * Bp, 8)   # Bp is a multiple of 8 -> aligned
        hb = h.astype(cdt)
        gh = jnp.dot(hb, whh, preferred_element_type=f32)        # (Bp, 3H)
        gi_t = gi_ref[pl.ds(row, Bp), :]                         # (Bp, 3H)
        rz = jax.nn.sigmoid(gi_t[:, :H2] + gh[:, :H2])           # fused r|z sigmoid
        r = rz[:, :H]
        z = rz[:, H:H2]
        n = jnp.tanh(gi_t[:, H2:H3] + r * (gh[:, H2:H3] + bhn))
        h_new = (1.0 - z) * n + z * h
        hs_ref[pl.ds(row, Bp), :] = h_new.astype(hs_ref.dtype)   # bf16 history
        return h_new

    h_last = jax.lax.fori_loop(0, T, step, h0_ref[...], unroll=min(T, 8))

    # ---- hoisted head (all timesteps at once) --------------------------------
    h_all = hs_ref[...]                   # already in compute dtype
    a2 = _leaky(jnp.dot(h_all, w2_ref[...],
                        preferred_element_type=f32) + b2_ref[...])
    q = jnp.dot(a2.astype(cdt), wo_ref[...],
                preferred_element_type=f32) + bo_ref[...]

    q_ref[...] = q                        # lane-dense (T*Bp, A_pad) store
    hfin_ref[...] = h_last                # f32 loop carry, written once


def rq_forward(x, h0, params, *, compute_dtype=jnp.bfloat16):
    """x: (B, T, obs_dim) f32, h0: (1, B, H) f32 -> (q: (B, T, A), h: (1, B, H))."""
    B, T, OBS = x.shape
    H = params["w1"].shape[0]
    A = params["wo"].shape[0]
    f32 = jnp.float32
    cdt = compute_dtype

    Bp = ((B + 7) // 8) * 8               # sublane-align batch
    Ap = ((A + 127) // 128) * 128         # lane-dense output head

    # (B, T, OBS) -> time-major flat (T*Bp, OBS); row index = t*Bp + b
    xt = jnp.transpose(x, (1, 0, 2))
    xt = jnp.pad(xt, ((0, 0), (0, Bp - B), (0, 0)))
    x_flat = xt.reshape(T * Bp, OBS).astype(cdt)

    h0_p = jnp.pad(h0[0].astype(f32), ((0, Bp - B), (0, 0)))     # (Bp, H)

    # Pre-transposed weights (matmul operands in compute_dtype, biases in f32).
    w1_t = params["w1"].T.astype(cdt)                            # (OBS, H)
    b1 = params["b1"].reshape(1, H).astype(f32)
    w2_t = params["w2"].T.astype(cdt)                            # (H, H)
    b2 = params["b2"].reshape(1, H).astype(f32)
    wo_tp = jnp.zeros((H, Ap), f32).at[:, :A].set(params["wo"].T.astype(f32)).astype(cdt)
    bo_p = jnp.zeros((1, Ap), f32).at[:, :A].set(params["bo"].reshape(1, A).astype(f32))

    wih, whh = params["wih"], params["whh"]                      # (3H, H)
    bih = params["bih"].reshape(3 * H).astype(f32)
    bhh = params["bhh"].reshape(3 * H).astype(f32)

    # Fused (H, 3H) gate weights: columns [0:H]=r, [H:2H]=z, [2H:3H]=n.
    wih_cat_t = jnp.concatenate(
        [wih[0 * H:1 * H].T, wih[1 * H:2 * H].T, wih[2 * H:3 * H].T], axis=1).astype(cdt)
    whh_cat_t = jnp.concatenate(
        [whh[0 * H:1 * H].T, whh[1 * H:2 * H].T, whh[2 * H:3 * H].T], axis=1).astype(cdt)
    # Fold r/z recurrent biases into the precomputed input-gate biases.
    bi_cat = jnp.concatenate(
        [bih[0 * H:1 * H] + bhh[0 * H:1 * H],
         bih[1 * H:2 * H] + bhh[1 * H:2 * H],
         bih[2 * H:3 * H]], axis=0).reshape(1, 3 * H)
    bh_n = bhh[2 * H:3 * H].reshape(1, H)

    # ---- explicit VMEM budget (safe raise above v5e's 16 MiB default) -------
    def _nbytes(shape, dtype):
        return math.prod(shape) * jnp.dtype(dtype).itemsize

    cbytes = jnp.dtype(cdt).itemsize
    resident = (
        _nbytes((T * Bp, OBS), cdt) + _nbytes((Bp, H), f32)            # inputs
        + _nbytes((OBS, H), cdt) + _nbytes((1, H), f32)                # w1/b1
        + 2 * _nbytes((H, 3 * H), cdt) + _nbytes((1, 3 * H), f32)      # gru weights
        + _nbytes((1, H), f32)
        + _nbytes((H, H), cdt) + _nbytes((1, H), f32)                  # w2/b2
        + _nbytes((H, Ap), cdt) + _nbytes((1, Ap), f32)                # wo/bo
        + _nbytes((T * Bp, Ap), f32) + _nbytes((Bp, H), f32)           # outputs
        + _nbytes((T * Bp, 3 * H), f32) + T * Bp * H * cbytes          # scratches
    )
    vmem_limit = int(min(max(2 * resident + (4 << 20), 32 << 20), 128 << 20))

    q_pad, h_fin = pl.pallas_call(
        rq_kernel,
        out_shape=(jax.ShapeDtypeStruct((T * Bp, Ap), f32),
                   jax.ShapeDtypeStruct((Bp, H), f32)),
        scratch_shapes=[pltpu.VMEM((T * Bp, 3 * H), f32),   # fused gi (r|z|n)
                        pltpu.VMEM((T * Bp, H), cdt)],      # hidden history
        compiler_params=pltpu.CompilerParams(vmem_limit_bytes=vmem_limit),
    )(x_flat, h0_p,
      w1_t, b1,
      wih_cat_t, bi_cat,
      whh_cat_t, bh_n,
      w2_t, b2, wo_tp, bo_p)

    q = jnp.transpose(q_pad.reshape(T, Bp, Ap)[:, :B, :A], (1, 0, 2))   # (B, T, A)
    h_out = h_fin[:B][None]                                             # (1, B, H)
    return q, h_out


def reference_forward(x, h0, params):
    """Pure-JAX f32 reference matching the PyTorch module's forward."""
    B, T, OBS = x.shape
    H = params["w1"].shape[0]
    a1 = _leaky(jnp.einsum('bti,hi->bth', x, params["w1"]) + params["b1"].reshape(H))
    wih, whh = params["wih"], params["whh"]
    bih = params["bih"].reshape(3 * H)
    bhh = params["bhh"].reshape(3 * H)

    def cell(h, xt):
        gi = xt @ wih.T + bih
        gh = h @ whh.T + bhh
        i_r, i_z, i_n = gi[:, :H], gi[:, H:2 * H], gi[:, 2 * H:]
        h_r, h_z, h_n = gh[:, :H], gh[:, H:2 * H], gh[:, 2 * H:]
        r = jax.nn.sigmoid(i_r + h_r)
        z = jax.nn.sigmoid(i_z + h_z)
        n = jnp.tanh(i_n + r * h_n)
        h_new = (1.0 - z) * n + z * h
        return h_new, h_new

    h_last, hs = jax.lax.scan(cell, h0[0], jnp.transpose(a1, (1, 0, 2)))
    hs = jnp.transpose(hs, (1, 0, 2))                                    # (B, T, H)
    a2 = _leaky(jnp.einsum('bth,kh->btk', hs, params["w2"]) + params["b2"].reshape(H))
    q = jnp.einsum('bth,ah->bta', a2, params["wo"]) + params["bo"].reshape(-1)
    return q, h_last[None]


def init_params(key, obs_dim, h_size, a_dim):
    """Deterministic init matching the PyTorch module (Linear biases are zeroed)."""
    ks = jax.random.split(key, 8)
    gain_lrelu = math.sqrt(2.0 / (1.0 + NEG_SLOPE ** 2))  # calculate_gain('leaky_relu')

    def xavier_uniform(k, fan_out, fan_in, gain):
        bound = gain * math.sqrt(6.0 / (fan_in + fan_out))
        return jax.random.uniform(k, (fan_out, fan_in), jnp.float32, -bound, bound)

    s = 1.0 / math.sqrt(h_size)  # default nn.GRU init
    return dict(
        w1=xavier_uniform(ks[0], h_size, obs_dim, gain_lrelu),
        b1=jnp.zeros((1, h_size), jnp.float32),
        wih=jax.random.uniform(ks[1], (3 * h_size, h_size), jnp.float32, -s, s),
        whh=jax.random.uniform(ks[2], (3 * h_size, h_size), jnp.float32, -s, s),
        bih=jax.random.uniform(ks[3], (1, 3 * h_size), jnp.float32, -s, s),
        bhh=jax.random.uniform(ks[4], (1, 3 * h_size), jnp.float32, -s, s),
        w2=xavier_uniform(ks[5], h_size, h_size, gain_lrelu),
        b2=jnp.zeros((1, h_size), jnp.float32),
        wo=xavier_uniform(ks[6], a_dim, h_size, 1.0),  # act_fn='linear' -> gain 1
        bo=jnp.zeros((1, a_dim), jnp.float32),
    )


if __name__ == "__main__":
    B, T, OBS = 2, 8, 16          # batch=2, seq=8, flattened obs dim=16
    H = 32                        # h_size
    A = 4 + 1                     # len(action_set) + 1

    key = jax.random.PRNGKey(0)
    k_x, k_p = jax.random.split(key)
    x = jax.random.normal(k_x, (B, T, OBS), jnp.float32)
    h0 = jnp.zeros((1, B, H), jnp.float32)     # h=None -> zeros, nn.GRU convention
    params = init_params(k_p, OBS, H, A)

    q, h = jax.jit(rq_forward)(x, h0, params)
    jax.block_until_ready((q, h))

    assert q.shape == (B, T, A) and h.shape == (1, B, H)

    # Correctness check vs pure-JAX f32 reference (loose tol: bf16 MXU operands;
    # pass compute_dtype=jnp.float32 for bit-tight f32 semantics).
    q_ref, h_ref = reference_forward(x, h0, params)
    assert bool(jnp.allclose(q, q_ref, atol=1e-1, rtol=1e-1))
    assert bool(jnp.allclose(h, h_ref, atol=1e-1, rtol=1e-1))

    print("KERNEL_OK")
</pallas_src>

<mosaic_0001>
module attributes {stable_mosaic.version = 11 : i64} {
  func.func @rq_kernel(%arg0: memref<64x16xbf16, #tpu.memory_space<vmem>>, %arg1: memref<8x32xf32, #tpu.memory_space<vmem>>, %arg2: memref<16x32xbf16, #tpu.memory_space<vmem>>, %arg3: memref<1x32xf32, #tpu.memory_space<vmem>>, %arg4: memref<32x96xbf16, #tpu.memory_space<vmem>>, %arg5: memref<1x96xf32, #tpu.memory_space<vmem>>, %arg6: memref<32x96xbf16, #tpu.memory_space<vmem>>, %arg7: memref<1x32xf32, #tpu.memory_space<vmem>>, %arg8: memref<32x32xbf16, #tpu.memory_space<vmem>>, %arg9: memref<1x32xf32, #tpu.memory_space<vmem>>, %arg10: memref<32x128xbf16, #tpu.memory_space<vmem>>, %arg11: memref<1x128xf32, #tpu.memory_space<vmem>>, %arg12: memref<64x128xf32, #tpu.memory_space<vmem>>, %arg13: memref<8x32xf32, #tpu.memory_space<vmem>>, %arg14: memref<64x96xf32, #tpu.memory_space<vmem>>, %arg15: memref<64x32xbf16, #tpu.memory_space<vmem>>) attributes {dimension_semantics = [], scalar_prefetch = 0 : i64, scratch_operands = 2 : i64, tpu.core_type = #tpu.core_type<tc>} {
    %c0 = arith.constant 0 : index
    %c0_0 = arith.constant 0 : index
    %0 = vector.load %arg0[%c0, %c0_0] : memref<64x16xbf16, #tpu.memory_space<vmem>>, vector<64x16xbf16>
    %c0_1 = arith.constant 0 : index
    %c0_2 = arith.constant 0 : index
    %1 = vector.load %arg2[%c0_1, %c0_2] : memref<16x32xbf16, #tpu.memory_space<vmem>>, vector<16x32xbf16>
    %cst = arith.constant dense<0.000000e+00> : vector<64x32xf32>
    %2 = tpu.matmul %0, %1, %cst {dimension_numbers = #tpu.dot_dimension_numbers<[1], [0], [0], [1], [0, 0, 1, 1], [], []>} : vector<64x16xbf16>, vector<16x32xbf16>, vector<64x32xf32> -> vector<64x32xf32>
    %c0_3 = arith.constant 0 : index
    %c0_4 = arith.constant 0 : index
    %3 = vector.load %arg3[%c0_3, %c0_4] : memref<1x32xf32, #tpu.memory_space<vmem>>, vector<1x32xf32>
    %4 = vector.broadcast %3 : vector<1x32xf32> to vector<64x32xf32>
    %5 = arith.addf %2, %4 : vector<64x32xf32>
    %cst_5 = arith.constant 0.000000e+00 : f32
    %6 = vector.broadcast %cst_5 : f32 to vector<64x32xf32>
    %7 = arith.cmpf oge, %5, %6 : vector<64x32xf32>
    %cst_6 = arith.constant 0.00999999977 : f32
    %8 = vector.broadcast %cst_6 : f32 to vector<64x32xf32>
    %9 = arith.mulf %8, %5 : vector<64x32xf32>
    %10 = arith.select %7, %5, %9 : vector<64x32xi1>, vector<64x32xf32>
    %11 = arith.truncf %10 : vector<64x32xf32> to vector<64x32xbf16>
    %c0_7 = arith.constant 0 : index
    %c0_8 = arith.constant 0 : index
    %12 = vector.load %arg4[%c0_7, %c0_8] : memref<32x96xbf16, #tpu.memory_space<vmem>>, vector<32x96xbf16>
    %cst_9 = arith.constant dense<0.000000e+00> : vector<64x96xf32>
    %13 = tpu.matmul %11, %12, %cst_9 {dimension_numbers = #tpu.dot_dimension_numbers<[1], [0], [0], [1], [0, 0, 1, 1], [], []>} : vector<64x32xbf16>, vector<32x96xbf16>, vector<64x96xf32> -> vector<64x96xf32>
    %c0_10 = arith.constant 0 : index
    %c0_11 = arith.constant 0 : index
    %14 = vector.load %arg5[%c0_10, %c0_11] : memref<1x96xf32, #tpu.memory_space<vmem>>, vector<1x96xf32>
    %15 = vector.broadcast %14 : vector<1x96xf32> to vector<64x96xf32>
    %16 = arith.addf %13, %15 : vector<64x96xf32>
    %c0_12 = arith.constant 0 : index
    %c0_13 = arith.constant 0 : index
    %17 = vector.load %arg14[%c0_12, %c0_13] : memref<64x96xf32, #tpu.memory_space<vmem>>, vector<64x96xf32>
    tpu.vector_store %arg14[%c0_12, %c0_13], %16 {strides = array<i32>} : memref<64x96xf32, #tpu.memory_space<vmem>>, vector<64x96xf32>,
    %c0_14 = arith.constant 0 : index
    %c0_15 = arith.constant 0 : index
    %18 = vector.load %arg6[%c0_14, %c0_15] : memref<32x96xbf16, #tpu.memory_space<vmem>>, vector<32x96xbf16>
    %c0_16 = arith.constant 0 : index
    %c0_17 = arith.constant 0 : index
    %19 = vector.load %arg7[%c0_16, %c0_17] : memref<1x32xf32, #tpu.memory_space<vmem>>, vector<1x32xf32>
    %c0_18 = arith.constant 0 : index
    %c0_19 = arith.constant 0 : index
    %20 = vector.load %arg1[%c0_18, %c0_19] : memref<8x32xf32, #tpu.memory_space<vmem>>, vector<8x32xf32>
    %c0_i32 = arith.constant 0 : i32
    %c8_i32 = arith.constant 8 : i32
    %21 = arith.muli %c0_i32, %c8_i32 : i32
    %22 = tpu.assume_multiple %21, 8 : i32
    %23 = arith.truncf %20 : vector<8x32xf32> to vector<8x32xbf16>
    %cst_20 = arith.constant dense<0.000000e+00> : vector<8x96xf32>
    %24 = tpu.matmul %23, %18, %cst_20 {dimension_numbers = #tpu.dot_dimension_numbers<[1], [0], [0], [1], [0, 0, 1, 1], [], []>} : vector<8x32xbf16>, vector<32x96xbf16>, vector<8x96xf32> -> vector<8x96xf32>
    %25 = arith.index_cast %22 : i32 to index
    %c0_21 = arith.constant 0 : index
    %26 = vector.load %arg14[%25, %c0_21] : memref<64x96xf32, #tpu.memory_space<vmem>>, vector<8x96xf32>
    %27 = vector.extract_strided_slice %26 {offsets = [0, 0], sizes = [8, 64], strides = [1, 1]} : vector<8x96xf32> to vector<8x64xf32>
    %28 = vector.extract_strided_slice %24 {offsets = [0, 0], sizes = [8, 64], strides = [1, 1]} : vector<8x96xf32> to vector<8x64xf32>
    %29 = arith.addf %27, %28 : vector<8x64xf32>
    %30 = arith.negf %29 : vector<8x64xf32>
    %31 = math.exp %30 : vector<8x64xf32>
    %cst_22 = arith.constant 1.000000e+00 : f32
    %32 = vector.broadcast %cst_22 : f32 to vector<8x64xf32>
    %33 = arith.addf %32, %31 : vector<8x64xf32>
    %34 = arith.divf %32, %33 : vector<8x64xf32>
    %35 = vector.extract_strided_slice %34 {offsets = [0, 0], sizes = [8, 32], strides = [1, 1]} : vector<8x64xf32> to vector<8x32xf32>
    %36 = vector.extract_strided_slice %34 {offsets = [0, 32], sizes = [8, 32], strides = [1, 1]} : vector<8x64xf32> to vector<8x32xf32>
    %37 = vector.extract_strided_slice %26 {offsets = [0, 64], sizes = [8, 32], strides = [1, 1]} : vector<8x96xf32> to vector<8x32xf32>
    %38 = vector.extract_strided_slice %24 {offsets = [0, 64], sizes = [8, 32], strides = [1, 1]} : vector<8x96xf32> to vector<8x32xf32>
    %39 = vector.broadcast %19 : vector<1x32xf32> to vector<8x32xf32>
    %40 = arith.addf %38, %39 : vector<8x32xf32>
    %41 = arith.mulf %35, %40 : vector<8x32xf32>
    %42 = arith.addf %37, %41 : vector<8x32xf32>
    %43 = math.tanh %42 : vector<8x32xf32>
    %cst_23 = arith.constant 1.000000e+00 : f32
    %44 = vector.broadcast %cst_23 : f32 to vector<8x32xf32>
    %45 = arith.subf %44, %36 : vector<8x32xf32>
    %46 = arith.mulf %45, %43 : vector<8x32xf32>
    %47 = arith.mulf %36, %20 : vector<8x32xf32>
    %48 = arith.addf %46, %47 : vector<8x32xf32>
    %49 = arith.truncf %48 : vector<8x32xf32> to vector<8x32xbf16>
    %50 = arith.index_cast %22 : i32 to index
    %c0_24 = arith.constant 0 : index
    %51 = vector.load %arg15[%50, %c0_24] : memref<64x32xbf16, #tpu.memory_space<vmem>>, vector<8x32xbf16>
    tpu.vector_store %arg15[%50, %c0_24], %49 {strides = array<i32>} : memref<64x32xbf16, #tpu.memory_space<vmem>>, vector<8x32xbf16>,
    %c1_i32 = arith.constant 1 : i32
    %c8_i32_25 = arith.constant 8 : i32
    %52 = arith.muli %c1_i32, %c8_i32_25 : i32
    %53 = tpu.assume_multiple %52, 8 : i32
    %54 = arith.truncf %48 : vector<8x32xf32> to vector<8x32xbf16>
    %cst_26 = arith.constant dense<0.000000e+00> : vector<8x96xf32>
    %55 = tpu.matmul %54, %18, %cst_26 {dimension_numbers = #tpu.dot_dimension_numbers<[1], [0], [0], [1], [0, 0, 1, 1], [], []>} : vector<8x32xbf16>, vector<32x96xbf16>, vector<8x96xf32> -> vector<8x96xf32>
    %56 = arith.index_cast %53 : i32 to index
    %c0_27 = arith.constant 0 : index
    %57 = vector.load %arg14[%56, %c0_27] : memref<64x96xf32, #tpu.memory_space<vmem>>, vector<8x96xf32>
    %58 = vector.extract_strided_slice %57 {offsets = [0, 0], sizes = [8, 64], strides = [1, 1]} : vector<8x96xf32> to vector<8x64xf32>
    %59 = vector.extract_strided_slice %55 {offsets = [0, 0], sizes = [8, 64], strides = [1, 1]} : vector<8x96xf32> to vector<8x64xf32>
    %60 = arith.addf %58, %59 : vector<8x64xf32>
    %61 = arith.negf %60 : vector<8x64xf32>
    %62 = math.exp %61 : vector<8x64xf32>
    %cst_28 = arith.constant 1.000000e+00 : f32
    %63 = vector.broadcast %cst_28 : f32 to vector<8x64xf32>
    %64 = arith.addf %63, %62 : vector<8x64xf32>
    %65 = arith.divf %63, %64 : vector<8x64xf32>
    %66 = vector.extract_strided_slice %65 {offsets = [0, 0], sizes = [8, 32], strides = [1, 1]} : vector<8x64xf32> to vector<8x32xf32>
    %67 = vector.extract_strided_slice %65 {offsets = [0, 32], sizes = [8, 32], strides = [1, 1]} : vector<8x64xf32> to vector<8x32xf32>
    %68 = vector.extract_strided_slice %57 {offsets = [0, 64], sizes = [8, 32], strides = [1, 1]} : vector<8x96xf32> to vector<8x32xf32>
    %69 = vector.extract_strided_slice %55 {offsets = [0, 64], sizes = [8, 32], strides = [1, 1]} : vector<8x96xf32> to vector<8x32xf32>
    %70 = vector.broadcast %19 : vector<1x32xf32> to vector<8x32xf32>
    %71 = arith.addf %69, %70 : vector<8x32xf32>
    %72 = arith.mulf %66, %71 : vector<8x32xf32>
    %73 = arith.addf %68, %72 : vector<8x32xf32>
    %74 = math.tanh %73 : vector<8x32xf32>
    %cst_29 = arith.constant 1.000000e+00 : f32
    %75 = vector.broadcast %cst_29 : f32 to vector<8x32xf32>
    %76 = arith.subf %75, %67 : vector<8x32xf32>
    %77 = arith.mulf %76, %74 : vector<8x32xf32>
    %78 = arith.mulf %67, %48 : vector<8x32xf32>
    %79 = arith.addf %77, %78 : vector<8x32xf32>
    %80 = arith.truncf %79 : vector<8x32xf32> to vector<8x32xbf16>
    %81 = arith.index_cast %53 : i32 to index
    %c0_30 = arith.constant 0 : index
    %82 = vector.load %arg15[%81, %c0_30] : memref<64x32xbf16, #tpu.memory_space<vmem>>, vector<8x32xbf16>
    tpu.vector_store %arg15[%81, %c0_30], %80 {strides = array<i32>} : memref<64x32xbf16, #tpu.memory_space<vmem>>, vector<8x32xbf16>,
    %c2_i32 = arith.constant 2 : i32
    %c8_i32_31 = arith.constant 8 : i32
    %83 = arith.muli %c2_i32, %c8_i32_31 : i32
    %84 = tpu.assume_multiple %83, 8 : i32
    %85 = arith.truncf %79 : vector<8x32xf32> to vector<8x32xbf16>
    %cst_32 = arith.constant dense<0.000000e+00> : vector<8x96xf32>
    %86 = tpu.matmul %85, %18, %cst_32 {dimension_numbers = #tpu.dot_dimension_numbers<[1], [0], [0], [1], [0, 0, 1, 1], [], []>} : vector<8x32xbf16>, vector<32x96xbf16>, vector<8x96xf32> -> vector<8x96xf32>
    %87 = arith.index_cast %84 : i32 to index
    %c0_33 = arith.constant 0 : index
    %88 = vector.load %arg14[%87, %c0_33] : memref<64x96xf32, #tpu.memory_space<vmem>>, vector<8x96xf32>
    %89 = vector.extract_strided_slice %88 {offsets = [0, 0], sizes = [8, 64], strides = [1, 1]} : vector<8x96xf32> to vector<8x64xf32>
    %90 = vector.extract_strided_slice %86 {offsets = [0, 0], sizes = [8, 64], strides = [1, 1]} : vector<8x96xf32> to vector<8x64xf32>
    %91 = arith.addf %89, %90 : vector<8x64xf32>
    %92 = arith.negf %91 : vector<8x64xf32>
    %93 = math.exp %92 : vector<8x64xf32>
    %cst_34 = arith.constant 1.000000e+00 : f32
    %94 = vector.broadcast %cst_34 : f32 to vector<8x64xf32>
    %95 = arith.addf %94, %93 : vector<8x64xf32>
    %96 = arith.divf %94, %95 : vector<8x64xf32>
    %97 = vector.extract_strided_slice %96 {offsets = [0, 0], sizes = [8, 32], strides = [1, 1]} : vector<8x64xf32> to vector<8x32xf32>
    %98 = vector.extract_strided_slice %96 {offsets = [0, 32], sizes = [8, 32], strides = [1, 1]} : vector<8x64xf32> to vector<8x32xf32>
    %99 = vector.extract_strided_slice %88 {offsets = [0, 64], sizes = [8, 32], strides = [1, 1]} : vector<8x96xf32> to vector<8x32xf32>
    %100 = vector.extract_strided_slice %86 {offsets = [0, 64], sizes = [8, 32], strides = [1, 1]} : vector<8x96xf32> to vector<8x32xf32>
    %101 = vector.broadcast %19 : vector<1x32xf32> to vector<8x32xf32>
    %102 = arith.addf %100, %101 : vector<8x32xf32>
    %103 = arith.mulf %97, %102 : vector<8x32xf32>
    %104 = arith.addf %99, %103 : vector<8x32xf32>
    %105 = math.tanh %104 : vector<8x32xf32>
    %cst_35 = arith.constant 1.000000e+00 : f32
    %106 = vector.broadcast %cst_35 : f32 to vector<8x32xf32>
    %107 = arith.subf %106, %98 : vector<8x32xf32>
    %108 = arith.mulf %107, %105 : vector<8x32xf32>
    %109 = arith.mulf %98, %79 : vector<8x32xf32>
    %110 = arith.addf %108, %109 : vector<8x32xf32>
    %111 = arith.truncf %110 : vector<8x32xf32> to vector<8x32xbf16>
    %112 = arith.index_cast %84 : i32 to index
    %c0_36 = arith.constant 0 : index
    %113 = vector.load %arg15[%112, %c0_36] : memref<64x32xbf16, #tpu.memory_space<vmem>>, vector<8x32xbf16>
    tpu.vector_store %arg15[%112, %c0_36], %111 {strides = array<i32>} : memref<64x32xbf16, #tpu.memory_space<vmem>>, vector<8x32xbf16>,
    %c3_i32 = arith.constant 3 : i32
    %c8_i32_37 = arith.constant 8 : i32
    %114 = arith.muli %c3_i32, %c8_i32_37 : i32
    %115 = tpu.assume_multiple %114, 8 : i32
    %116 = arith.truncf %110 : vector<8x32xf32> to vector<8x32xbf16>
    %cst_38 = arith.constant dense<0.000000e+00> : vector<8x96xf32>
    %117 = tpu.matmul %116, %18, %cst_38 {dimension_numbers = #tpu.dot_dimension_numbers<[1], [0], [0], [1], [0, 0, 1, 1], [], []>} : vector<8x32xbf16>, vector<32x96xbf16>, vector<8x96xf32> -> vector<8x96xf32>
    %118 = arith.index_cast %115 : i32 to index
    %c0_39 = arith.constant 0 : index
    %119 = vector.load %arg14[%118, %c0_39] : memref<64x96xf32, #tpu.memory_space<vmem>>, vector<8x96xf32>
    %120 = vector.extract_strided_slice %119 {offsets = [0, 0], sizes = [8, 64], strides = [1, 1]} : vector<8x96xf32> to vector<8x64xf32>
    %121 = vector.extract_strided_slice %117 {offsets = [0, 0], sizes = [8, 64], strides = [1, 1]} : vector<8x96xf32> to vector<8x64xf32>
    %122 = arith.addf %120, %121 : vector<8x64xf32>
    %123 = arith.negf %122 : vector<8x64xf32>
    %124 = math.exp %123 : vector<8x64xf32>
    %cst_40 = arith.constant 1.000000e+00 : f32
    %125 = vector.broadcast %cst_40 : f32 to vector<8x64xf32>
    %126 = arith.addf %125, %124 : vector<8x64xf32>
    %127 = arith.divf %125, %126 : vector<8x64xf32>
    %128 = vector.extract_strided_slice %127 {offsets = [0, 0], sizes = [8, 32], strides = [1, 1]} : vector<8x64xf32> to vector<8x32xf32>
    %129 = vector.extract_strided_slice %127 {offsets = [0, 32], sizes = [8, 32], strides = [1, 1]} : vector<8x64xf32> to vector<8x32xf32>
    %130 = vector.extract_strided_slice %119 {offsets = [0, 64], sizes = [8, 32], strides = [1, 1]} : vector<8x96xf32> to vector<8x32xf32>
    %131 = vector.extract_strided_slice %117 {offsets = [0, 64], sizes = [8, 32], strides = [1, 1]} : vector<8x96xf32> to vector<8x32xf32>
    %132 = vector.broadcast %19 : vector<1x32xf32> to vector<8x32xf32>
    %133 = arith.addf %131, %132 : vector<8x32xf32>
    %134 = arith.mulf %128, %133 : vector<8x32xf32>
    %135 = arith.addf %130, %134 : vector<8x32xf32>
    %136 = math.tanh %135 : vector<8x32xf32>
    %cst_41 = arith.constant 1.000000e+00 : f32
    %137 = vector.broadcast %cst_41 : f32 to vector<8x32xf32>
    %138 = arith.subf %137, %129 : vector<8x32xf32>
    %139 = arith.mulf %138, %136 : vector<8x32xf32>
    %140 = arith.mulf %129, %110 : vector<8x32xf32>
    %141 = arith.addf %139, %140 : vector<8x32xf32>
    %142 = arith.truncf %141 : vector<8x32xf32> to vector<8x32xbf16>
    %143 = arith.index_cast %115 : i32 to index
    %c0_42 = arith.constant 0 : index
    %144 = vector.load %arg15[%143, %c0_42] : memref<64x32xbf16, #tpu.memory_space<vmem>>, vector<8x32xbf16>
    tpu.vector_store %arg15[%143, %c0_42], %142 {strides = array<i32>} : memref<64x32xbf16, #tpu.memory_space<vmem>>, vector<8x32xbf16>,
    %c4_i32 = arith.constant 4 : i32
    %c8_i32_43 = arith.constant 8 : i32
    %145 = arith.muli %c4_i32, %c8_i32_43 : i32
    %146 = tpu.assume_multiple %145, 8 : i32
    %147 = arith.truncf %141 : vector<8x32xf32> to vector<8x32xbf16>
    %cst_44 = arith.constant dense<0.000000e+00> : vector<8x96xf32>
    %148 = tpu.matmul %147, %18, %cst_44 {dimension_numbers = #tpu.dot_dimension_numbers<[1], [0], [0], [1], [0, 0, 1, 1], [], []>} : vector<8x32xbf16>, vector<32x96xbf16>, vector<8x96xf32> -> vector<8x96xf32>
    %149 = arith.index_cast %146 : i32 to index
    %c0_45 = arith.constant 0 : index
    %150 = vector.load %arg14[%149, %c0_45] : memref<64x96xf32, #tpu.memory_space<vmem>>, vector<8x96xf32>
    %151 = vector.extract_strided_slice %150 {offsets = [0, 0], sizes = [8, 64], strides = [1, 1]} : vector<8x96xf32> to vector<8x64xf32>
    %152 = vector.extract_strided_slice %148 {offsets = [0, 0], sizes = [8, 64], strides = [1, 1]} : vector<8x96xf32> to vector<8x64xf32>
    %153 = arith.addf %151, %152 : vector<8x64xf32>
    %154 = arith.negf %153 : vector<8x64xf32>
    %155 = math.exp %154 : vector<8x64xf32>
    %cst_46 = arith.constant 1.000000e+00 : f32
    %156 = vector.broadcast %cst_46 : f32 to vector<8x64xf32>
    %157 = arith.addf %156, %155 : vector<8x64xf32>
    %158 = arith.divf %156, %157 : vector<8x64xf32>
    %159 = vector.extract_strided_slice %158 {offsets = [0, 0], sizes = [8, 32], strides = [1, 1]} : vector<8x64xf32> to vector<8x32xf32>
    %160 = vector.extract_strided_slice %158 {offsets = [0, 32], sizes = [8, 32], strides = [1, 1]} : vector<8x64xf32> to vector<8x32xf32>
    %161 = vector.extract_strided_slice %150 {offsets = [0, 64], sizes = [8, 32], strides = [1, 1]} : vector<8x96xf32> to vector<8x32xf32>
    %162 = vector.extract_strided_slice %148 {offsets = [0, 64], sizes = [8, 32], strides = [1, 1]} : vector<8x96xf32> to vector<8x32xf32>
    %163 = vector.broadcast %19 : vector<1x32xf32> to vector<8x32xf32>
    %164 = arith.addf %162, %163 : vector<8x32xf32>
    %165 = arith.mulf %159, %164 : vector<8x32xf32>
    %166 = arith.addf %161, %165 : vector<8x32xf32>
    %167 = math.tanh %166 : vector<8x32xf32>
    %cst_47 = arith.constant 1.000000e+00 : f32
    %168 = vector.broadcast %cst_47 : f32 to vector<8x32xf32>
    %169 = arith.subf %168, %160 : vector<8x32xf32>
    %170 = arith.mulf %169, %167 : vector<8x32xf32>
    %171 = arith.mulf %160, %141 : vector<8x32xf32>
    %172 = arith.addf %170, %171 : vector<8x32xf32>
    %173 = arith.truncf %172 : vector<8x32xf32> to vector<8x32xbf16>
    %174 = arith.index_cast %146 : i32 to index
    %c0_48 = arith.constant 0 : index
    %175 = vector.load %arg15[%174, %c0_48] : memref<64x32xbf16, #tpu.memory_space<vmem>>, vector<8x32xbf16>
    tpu.vector_store %arg15[%174, %c0_48], %173 {strides = array<i32>} : memref<64x32xbf16, #tpu.memory_space<vmem>>, vector<8x32xbf16>,
    %c5_i32 = arith.constant 5 : i32
    %c8_i32_49 = arith.constant 8 : i32
    %176 = arith.muli %c5_i32, %c8_i32_49 : i32
    %177 = tpu.assume_multiple %176, 8 : i32
    %178 = arith.truncf %172 : vector<8x32xf32> to vector<8x32xbf16>
    %cst_50 = arith.constant dense<0.000000e+00> : vector<8x96xf32>
    %179 = tpu.matmul %178, %18, %cst_50 {dimension_numbers = #tpu.dot_dimension_numbers<[1], [0], [0], [1], [0, 0, 1, 1], [], []>} : vector<8x32xbf16>, vector<32x96xbf16>, vector<8x96xf32> -> vector<8x96xf32>
    %180 = arith.index_cast %177 : i32 to index
    %c0_51 = arith.constant 0 : index
    %181 = vector.load %arg14[%180, %c0_51] : memref<64x96xf32, #tpu.memory_space<vmem>>, vector<8x96xf32>
    %182 = vector.extract_strided_slice %181 {offsets = [0, 0], sizes = [8, 64], strides = [1, 1]} : vector<8x96xf32> to vector<8x64xf32>
    %183 = vector.extract_strided_slice %179 {offsets = [0, 0], sizes = [8, 64], strides = [1, 1]} : vector<8x96xf32> to vector<8x64xf32>
    %184 = arith.addf %182, %183 : vector<8x64xf32>
    %185 = arith.negf %184 : vector<8x64xf32>
    %186 = math.exp %185 : vector<8x64xf32>
    %cst_52 = arith.constant 1.000000e+00 : f32
    %187 = vector.broadcast %cst_52 : f32 to vector<8x64xf32>
    %188 = arith.addf %187, %186 : vector<8x64xf32>
    %189 = arith.divf %187, %188 : vector<8x64xf32>
    %190 = vector.extract_strided_slice %189 {offsets = [0, 0], sizes = [8, 32], strides = [1, 1]} : vector<8x64xf32> to vector<8x32xf32>
    %191 = vector.extract_strided_slice %189 {offsets = [0, 32], sizes = [8, 32], strides = [1, 1]} : vector<8x64xf32> to vector<8x32xf32>
    %192 = vector.extract_strided_slice %181 {offsets = [0, 64], sizes = [8, 32], strides = [1, 1]} : vector<8x96xf32> to vector<8x32xf32>
    %193 = vector.extract_strided_slice %179 {offsets = [0, 64], sizes = [8, 32], strides = [1, 1]} : vector<8x96xf32> to vector<8x32xf32>
    %194 = vector.broadcast %19 : vector<1x32xf32> to vector<8x32xf32>
    %195 = arith.addf %193, %194 : vector<8x32xf32>
    %196 = arith.mulf %190, %195 : vector<8x32xf32>
    %197 = arith.addf %192, %196 : vector<8x32xf32>
    %198 = math.tanh %197 : vector<8x32xf32>
    %cst_53 = arith.constant 1.000000e+00 : f32
    %199 = vector.broadcast %cst_53 : f32 to vector<8x32xf32>
    %200 = arith.subf %199, %191 : vector<8x32xf32>
    %201 = arith.mulf %200, %198 : vector<8x32xf32>
    %202 = arith.mulf %191, %172 : vector<8x32xf32>
    %203 = arith.addf %201, %202 : vector<8x32xf32>
    %204 = arith.truncf %203 : vector<8x32xf32> to vector<8x32xbf16>
    %205 = arith.index_cast %177 : i32 to index
    %c0_54 = arith.constant 0 : index
    %206 = vector.load %arg15[%205, %c0_54] : memref<64x32xbf16, #tpu.memory_space<vmem>>, vector<8x32xbf16>
    tpu.vector_store %arg15[%205, %c0_54], %204 {strides = array<i32>} : memref<64x32xbf16, #tpu.memory_space<vmem>>, vector<8x32xbf16>,
    %c6_i32 = arith.constant 6 : i32
    %c8_i32_55 = arith.constant 8 : i32
    %207 = arith.muli %c6_i32, %c8_i32_55 : i32
    %208 = tpu.assume_multiple %207, 8 : i32
    %209 = arith.truncf %203 : vector<8x32xf32> to vector<8x32xbf16>
    %cst_56 = arith.constant dense<0.000000e+00> : vector<8x96xf32>
    %210 = tpu.matmul %209, %18, %cst_56 {dimension_numbers = #tpu.dot_dimension_numbers<[1], [0], [0], [1], [0, 0, 1, 1], [], []>} : vector<8x32xbf16>, vector<32x96xbf16>, vector<8x96xf32> -> vector<8x96xf32>
    %211 = arith.index_cast %208 : i32 to index
    %c0_57 = arith.constant 0 : index
    %212 = vector.load %arg14[%211, %c0_57] : memref<64x96xf32, #tpu.memory_space<vmem>>, vector<8x96xf32>
    %213 = vector.extract_strided_slice %212 {offsets = [0, 0], sizes = [8, 64], strides = [1, 1]} : vector<8x96xf32> to vector<8x64xf32>
    %214 = vector.extract_strided_slice %210 {offsets = [0, 0], sizes = [8, 64], strides = [1, 1]} : vector<8x96xf32> to vector<8x64xf32>
    %215 = arith.addf %213, %214 : vector<8x64xf32>
    %216 = arith.negf %215 : vector<8x64xf32>
    %217 = math.exp %216 : vector<8x64xf32>
    %cst_58 = arith.constant 1.000000e+00 : f32
    %218 = vector.broadcast %cst_58 : f32 to vector<8x64xf32>
    %219 = arith.addf %218, %217 : vector<8x64xf32>
    %220 = arith.divf %218, %219 : vector<8x64xf32>
    %221 = vector.extract_strided_slice %220 {offsets = [0, 0], sizes = [8, 32], strides = [1, 1]} : vector<8x64xf32> to vector<8x32xf32>
    %222 = vector.extract_strided_slice %220 {offsets = [0, 32], sizes = [8, 32], strides = [1, 1]} : vector<8x64xf32> to vector<8x32xf32>
    %223 = vector.extract_strided_slice %212 {offsets = [0, 64], sizes = [8, 32], strides = [1, 1]} : vector<8x96xf32> to vector<8x32xf32>
    %224 = vector.extract_strided_slice %210 {offsets = [0, 64], sizes = [8, 32], strides = [1, 1]} : vector<8x96xf32> to vector<8x32xf32>
    %225 = vector.broadcast %19 : vector<1x32xf32> to vector<8x32xf32>
    %226 = arith.addf %224, %225 : vector<8x32xf32>
    %227 = arith.mulf %221, %226 : vector<8x32xf32>
    %228 = arith.addf %223, %227 : vector<8x32xf32>
    %229 = math.tanh %228 : vector<8x32xf32>
    %cst_59 = arith.constant 1.000000e+00 : f32
    %230 = vector.broadcast %cst_59 : f32 to vector<8x32xf32>
    %231 = arith.subf %230, %222 : vector<8x32xf32>
    %232 = arith.mulf %231, %229 : vector<8x32xf32>
    %233 = arith.mulf %222, %203 : vector<8x32xf32>
    %234 = arith.addf %232, %233 : vector<8x32xf32>
    %235 = arith.truncf %234 : vector<8x32xf32> to vector<8x32xbf16>
    %236 = arith.index_cast %208 : i32 to index
    %c0_60 = arith.constant 0 : index
    %237 = vector.load %arg15[%236, %c0_60] : memref<64x32xbf16, #tpu.memory_space<vmem>>, vector<8x32xbf16>
    tpu.vector_store %arg15[%236, %c0_60], %235 {strides = array<i32>} : memref<64x32xbf16, #tpu.memory_space<vmem>>, vector<8x32xbf16>,
    %c7_i32 = arith.constant 7 : i32
    %c8_i32_61 = arith.constant 8 : i32
    %238 = arith.muli %c7_i32, %c8_i32_61 : i32
    %239 = tpu.assume_multiple %238, 8 : i32
    %240 = arith.truncf %234 : vector<8x32xf32> to vector<8x32xbf16>
    %cst_62 = arith.constant dense<0.000000e+00> : vector<8x96xf32>
    %241 = tpu.matmul %240, %18, %cst_62 {dimension_numbers = #tpu.dot_dimension_numbers<[1], [0], [0], [1], [0, 0, 1, 1], [], []>} : vector<8x32xbf16>, vector<32x96xbf16>, vector<8x96xf32> -> vector<8x96xf32>
    %242 = arith.index_cast %239 : i32 to index
    %c0_63 = arith.constant 0 : index
    %243 = vector.load %arg14[%242, %c0_63] : memref<64x96xf32, #tpu.memory_space<vmem>>, vector<8x96xf32>
    %244 = vector.extract_strided_slice %243 {offsets = [0, 0], sizes = [8, 64], strides = [1, 1]} : vector<8x96xf32> to vector<8x64xf32>
    %245 = vector.extract_strided_slice %241 {offsets = [0, 0], sizes = [8, 64], strides = [1, 1]} : vector<8x96xf32> to vector<8x64xf32>
    %246 = arith.addf %244, %245 : vector<8x64xf32>
    %247 = arith.negf %246 : vector<8x64xf32>
    %248 = math.exp %247 : vector<8x64xf32>
    %cst_64 = arith.constant 1.000000e+00 : f32
    %249 = vector.broadcast %cst_64 : f32 to vector<8x64xf32>
    %250 = arith.addf %249, %248 : vector<8x64xf32>
    %251 = arith.divf %249, %250 : vector<8x64xf32>
    %252 = vector.extract_strided_slice %251 {offsets = [0, 0], sizes = [8, 32], strides = [1, 1]} : vector<8x64xf32> to vector<8x32xf32>
    %253 = vector.extract_strided_slice %251 {offsets = [0, 32], sizes = [8, 32], strides = [1, 1]} : vector<8x64xf32> to vector<8x32xf32>
    %254 = vector.extract_strided_slice %243 {offsets = [0, 64], sizes = [8, 32], strides = [1, 1]} : vector<8x96xf32> to vector<8x32xf32>
    %255 = vector.extract_strided_slice %241 {offsets = [0, 64], sizes = [8, 32], strides = [1, 1]} : vector<8x96xf32> to vector<8x32xf32>
    %256 = vector.broadcast %19 : vector<1x32xf32> to vector<8x32xf32>
    %257 = arith.addf %255, %256 : vector<8x32xf32>
    %258 = arith.mulf %252, %257 : vector<8x32xf32>
    %259 = arith.addf %254, %258 : vector<8x32xf32>
    %260 = math.tanh %259 : vector<8x32xf32>
    %cst_65 = arith.constant 1.000000e+00 : f32
    %261 = vector.broadcast %cst_65 : f32 to vector<8x32xf32>
    %262 = arith.subf %261, %253 : vector<8x32xf32>
    %263 = arith.mulf %262, %260 : vector<8x32xf32>
    %264 = arith.mulf %253, %234 : vector<8x32xf32>
    %265 = arith.addf %263, %264 : vector<8x32xf32>
    %266 = arith.truncf %265 : vector<8x32xf32> to vector<8x32xbf16>
    %267 = arith.index_cast %239 : i32 to index
    %c0_66 = arith.constant 0 : index
    %268 = vector.load %arg15[%267, %c0_66] : memref<64x32xbf16, #tpu.memory_space<vmem>>, vector<8x32xbf16>
    tpu.vector_store %arg15[%267, %c0_66], %266 {strides = array<i32>} : memref<64x32xbf16, #tpu.memory_space<vmem>>, vector<8x32xbf16>,
    %c8_i32_67 = arith.constant 8 : i32
    %c0_68 = arith.constant 0 : index
    %c0_69 = arith.constant 0 : index
    %269 = vector.load %arg15[%c0_68, %c0_69] : memref<64x32xbf16, #tpu.memory_space<vmem>>, vector<64x32xbf16>
    %c0_70 = arith.constant 0 : index
    %c0_71 = arith.constant 0 : index
    %270 = vector.load %arg8[%c0_70, %c0_71] : memref<32x32xbf16, #tpu.memory_space<vmem>>, vector<32x32xbf16>
    %cst_72 = arith.constant dense<0.000000e+00> : vector<64x32xf32>
    %271 = tpu.matmul %269, %270, %cst_72 {dimension_numbers = #tpu.dot_dimension_numbers<[1], [0], [0], [1], [0, 0, 1, 1], [], []>} : vector<64x32xbf16>, vector<32x32xbf16>, vector<64x32xf32> -> vector<64x32xf32>
    %c0_73 = arith.constant 0 : index
    %c0_74 = arith.constant 0 : index
    %272 = vector.load %arg9[%c0_73, %c0_74] : memref<1x32xf32, #tpu.memory_space<vmem>>, vector<1x32xf32>
    %273 = vector.broadcast %272 : vector<1x32xf32> to vector<64x32xf32>
    %274 = arith.addf %271, %273 : vector<64x32xf32>
    %cst_75 = arith.constant 0.000000e+00 : f32
    %275 = vector.broadcast %cst_75 : f32 to vector<64x32xf32>
    %276 = arith.cmpf oge, %274, %275 : vector<64x32xf32>
    %cst_76 = arith.constant 0.00999999977 : f32
    %277 = vector.broadcast %cst_76 : f32 to vector<64x32xf32>
    %278 = arith.mulf %277, %274 : vector<64x32xf32>
    %279 = arith.select %276, %274, %278 : vector<64x32xi1>, vector<64x32xf32>
    %280 = arith.truncf %279 : vector<64x32xf32> to vector<64x32xbf16>
    %c0_77 = arith.constant 0 : index
    %c0_78 = arith.constant 0 : index
    %281 = vector.load %arg10[%c0_77, %c0_78] : memref<32x128xbf16, #tpu.memory_space<vmem>>, vector<32x128xbf16>
    %cst_79 = arith.constant dense<0.000000e+00> : vector<64x128xf32>
    %282 = tpu.matmul %280, %281, %cst_79 {dimension_numbers = #tpu.dot_dimension_numbers<[1], [0], [0], [1], [0, 0, 1, 1], [], []>} : vector<64x32xbf16>, vector<32x128xbf16>, vector<64x128xf32> -> vector<64x128xf32>
    %c0_80 = arith.constant 0 : index
    %c0_81 = arith.constant 0 : index
    %283 = vector.load %arg11[%c0_80, %c0_81] : memref<1x128xf32, #tpu.memory_space<vmem>>, vector<1x128xf32>
    %284 = vector.broadcast %283 : vector<1x128xf32> to vector<64x128xf32>
    %285 = arith.addf %282, %284 : vector<64x128xf32>
    %c0_82 = arith.constant 0 : index
    %c0_83 = arith.constant 0 : index
    %286 = vector.load %arg12[%c0_82, %c0_83] : memref<64x128xf32, #tpu.memory_space<vmem>>, vector<64x128xf32>
    tpu.vector_store %arg12[%c0_82, %c0_83], %285 {strides = array<i32>} : memref<64x128xf32, #tpu.memory_space<vmem>>, vector<64x128xf32>,
    %c0_84 = arith.constant 0 : index
    %c0_85 = arith.constant 0 : index
    %287 = vector.load %arg13[%c0_84, %c0_85] : memref<8x32xf32, #tpu.memory_space<vmem>>, vector<8x32xf32>
    tpu.vector_store %arg13[%c0_84, %c0_85], %265 {strides = array<i32>} : memref<8x32xf32, #tpu.memory_space<vmem>>, vector<8x32xf32>,
    return
  }
}

</mosaic_0001>

<llo_original>
// kernel: rq_forward.1
$region0: #{rq_forward.1}
  #allocation0 [shape = 'u32[]', space=smem, size = 0x4, offset = 0x4, fixed_abs, tag = 'smem constant byte address 0x4 - core index']
  #allocation1 [shape = 'u32[72,128]{1,0:T(1,128)}', space=vmem, size = 0x9000, scoped, tag = 'internal scratch']
  #allocation2 [shape = 'f32[64,96]{1,0:T(8,128)}', space=vmem, size = 0x8000, scoped, tag = 'scratch operand']
  #allocation3 [shape = 'bf16[64,32]{1,0:T(8,128)(2,1)}', space=vmem, size = 0x4000, scoped, tag = 'scratch operand']
  %s0 = inlined_call_operand.vmem [shape: bf16[64,16], index: 0, kind: input, shape index: {}]
  %s1 = inlined_call_operand.vmem [shape: f32[8,32], index: 1, kind: input, shape index: {}]
  %s2 = inlined_call_operand.vmem [shape: bf16[16,32], index: 2, kind: input, shape index: {}]
  %s3 = inlined_call_operand.vmem [shape: f32[1,32], index: 3, kind: input, shape index: {}]
  %s4 = inlined_call_operand.vmem [shape: bf16[32,96], index: 4, kind: input, shape index: {}]
  %s5 = inlined_call_operand.vmem [shape: f32[1,96], index: 5, kind: input, shape index: {}]
  %s6 = inlined_call_operand.vmem [shape: bf16[32,96], index: 6, kind: input, shape index: {}]
  %s7 = inlined_call_operand.vmem [shape: f32[1,32], index: 7, kind: input, shape index: {}]
  %s8 = inlined_call_operand.vmem [shape: bf16[32,32], index: 8, kind: input, shape index: {}]
  %s9 = inlined_call_operand.vmem [shape: f32[1,32], index: 9, kind: input, shape index: {}]
  %s10 = inlined_call_operand.vmem [shape: bf16[32,128], index: 10, kind: input, shape index: {}]
  %s11 = inlined_call_operand.vmem [shape: f32[1,128], index: 11, kind: input, shape index: {}]
  %s12 = inlined_call_operand.vmem [shape: f32[64,128], index: 12, kind: output, shape index: {0}]
  %s13 = inlined_call_operand.vmem [shape: f32[8,32], index: 13, kind: output, shape index: {1}]
  %14 = xla_tuple %s12, %s13
  %s15 = sld [smem:[#allocation0]]
  $region66: #{rq_forward.1} parent=0
    _
  %s17 = ssub.s32 1, %s15
  %s18 = scalar_select 0, %s17, %s15
  // Predicated region
  $region2: #{rq_forward.1} parent=0 // pred_check
    _
  $region3: #{rq_forward.1} parent=0 // pred_check_branch
    %20 = sbr.rel (0) target = $region5
  $region4: #{rq_forward.1} parent=0 // pred_region
    _
  $region5: #{rq_forward.1} parent=0 // pred_fallthru
    _
  // Predicated region
  $region6: #{rq_forward.1} parent=0 // pred_check
    _
  $region7: #{rq_forward.1} parent=0 // pred_check_branch
    %22 = sbr.rel (0) target = $region9
  $region8: #{rq_forward.1} parent=0 // pred_region
    _
  $region9: #{rq_forward.1} parent=0 // pred_fallthru
    _
  // Predicated region
  $region10: #{rq_forward.1} parent=0 // pred_check
    _
  $region11: #{rq_forward.1} parent=0 // pred_check_branch
    %24 = sbr.rel (0) target = $region13
  $region12: #{rq_forward.1} parent=0 // pred_region
    _
  $region13: #{rq_forward.1} parent=0 // pred_fallthru
    _
  // Predicated region
  $region14: #{rq_forward.1} parent=0 // pred_check
    _
  $region15: #{rq_forward.1} parent=0 // pred_check_branch
    %26 = sbr.rel (0) target = $region17
  $region16: #{rq_forward.1} parent=0 // pred_region
    _
  $region17: #{rq_forward.1} parent=0 // pred_fallthru
    _
  // Predicated region
  $region18: #{rq_forward.1} parent=0 // pred_check
    _
  $region19: #{rq_forward.1} parent=0 // pred_check_branch
    %28 = sbr.rel (0) target = $region21
  $region20: #{rq_forward.1} parent=0 // pred_region
    _
  $region21: #{rq_forward.1} parent=0 // pred_fallthru
    _
  // Predicated region
  $region22: #{rq_forward.1} parent=0 // pred_check
    _
  $region23: #{rq_forward.1} parent=0 // pred_check_branch
    %30 = sbr.rel (0) target = $region25
  $region24: #{rq_forward.1} parent=0 // pred_region
    _
  $region25: #{rq_forward.1} parent=0 // pred_fallthru
    _
  // Predicated region
  $region26: #{rq_forward.1} parent=0 // pred_check
    _
  $region27: #{rq_forward.1} parent=0 // pred_check_branch
    %32 = sbr.rel (0) target = $region29
  $region28: #{rq_forward.1} parent=0 // pred_region
    _
  $region29: #{rq_forward.1} parent=0 // pred_fallthru
    _
  // Predicated region
  $region30: #{rq_forward.1} parent=0 // pred_check
    _
  $region31: #{rq_forward.1} parent=0 // pred_check_branch
    %34 = sbr.rel (0) target = $region33
  $region32: #{rq_forward.1} parent=0 // pred_region
    _
  $region33: #{rq_forward.1} parent=0 // pred_fallthru
    _
  // Predicated region
  $region34: #{rq_forward.1} parent=0 // pred_check
    _
  $region35: #{rq_forward.1} parent=0 // pred_check_branch
    %36 = sbr.rel (0) target = $region37
  $region36: #{rq_forward.1} parent=0 // pred_region
    _
  $region37: #{rq_forward.1} parent=0 // pred_fallthru
    _
  // Predicated region
  $region38: #{rq_forward.1} parent=0 // pred_check
    _
  $region39: #{rq_forward.1} parent=0 // pred_check_branch
    %38 = sbr.rel (0) target = $region41
  $region40: #{rq_forward.1} parent=0 // pred_region
    _
  $region41: #{rq_forward.1} parent=0 // pred_fallthru
    _
  // Predicated region
  $region42: #{rq_forward.1} parent=0 // pred_check
    _
  $region43: #{rq_forward.1} parent=0 // pred_check_branch
    %40 = sbr.rel (0) target = $region45
  $region44: #{rq_forward.1} parent=0 // pred_region
    _
  $region45: #{rq_forward.1} parent=0 // pred_fallthru
    _
  // Predicated region
  $region46: #{rq_forward.1} parent=0 // pred_check
    _
  $region47: #{rq_forward.1} parent=0 // pred_check_branch
    %42 = sbr.rel (0) target = $region49
  $region48: #{rq_forward.1} parent=0 // pred_region
    _
  $region49: #{rq_forward.1} parent=0 // pred_fallthru
    _
  %v44 = vld [vmem:[%s0] sm:$0xf]
  %v45 = vld [vmem:[%s0 + $0x4] sm:$0xf]
  %v46 = vld [vmem:[%s0 + $0x8] sm:$0xf]
  %v47 = vld [vmem:[%s0 + $0xc] sm:$0xf]
  %v48 = vld [vmem:[%s0 + $0x10] sm:$0xf]
  %v49 = vld [vmem:[%s0 + $0x14] sm:$0xf]
  %v50 = vld [vmem:[%s0 + $0x18] sm:$0xf]
  %v51 = vld [vmem:[%s0 + $0x1c] sm:$0xf]
  %v52 = vld [vmem:[%s2] sm:$0xf]
  %v53 = vld [vmem:[%s2 + $0x4] sm:$0xf]
  %v54 = vld [vmem:[%s3] sm:$0x1]
  %v56 = vperm.slane %v54, 0
  %v66 = vunpack.c.l.b16 %v44
  %v67 = vunpack.c.l.b16 %v45
  %v68 = vunpack.c.l.b16 %v46
  %v69 = vunpack.c.l.b16 %v47
  %v70 = vunpack.c.l.b16 %v48
  %v71 = vunpack.c.l.b16 %v49
  %v72 = vunpack.c.l.b16 %v50
  %v73 = vunpack.c.l.b16 %v51
  %v74 = vpack.c.b16 %v67, %v66
  %v75 = vpack.c.b16 %v69, %v68
  %v76 = vpack.c.b16 %v71, %v70
  %v77 = vpack.c.b16 %v73, %v72
  %v80 = vunpack.c.l.b16 %v52
  %v81 = vunpack.c.l.b16 %v53
  %v82 = vpack.c.b16 %v81, %v80
  %vm84 = vcmask 130048
  %v86 = vsel %vm84, %v74, 0
  %v89 = vsel %vm84, %v75, 0
  %v92 = vsel %vm84, %v76, 0
  %v95 = vsel %vm84, %v77, 0
  %97 = vmatpush.bf16.msra.mxu0 0
  %98 = vmatpush.bf16.msra.mxu0 0
  %99 = vmatpush.bf16.msra.mxu0 0
  %100 = vmatpush.bf16.msra.mxu0 0
  %101 = vmatpush.bf16.msra.mxu0 0
  %102 = vmatpush.bf16.msra.mxu0 0
  %103 = vmatpush.bf16.msra.mxu0 0
  %104 = vmatpush.bf16.msra.mxu0 %v82
  %105 = vmatmul.bf16.gmra.mxu0 %v86
  %v106 = vpop.f32.mrf.mxu0
  %v107 = vadd.f32 %v56, %v106
  %v108 = vpop.f32.mrf.mxu0
  %v109 = vadd.f32 %v56, %v108
  %110 = vmatmul.bf16.gmra.mxu0 %v89
  %v111 = vpop.f32.mrf.mxu0
  %v112 = vadd.f32 %v56, %v111
  %v113 = vpop.f32.mrf.mxu0
  %v114 = vadd.f32 %v56, %v113
  %115 = vmatmul.bf16.gmra.mxu0 %v92
  %v116 = vpop.f32.mrf.mxu0
  %v117 = vadd.f32 %v56, %v116
  %v118 = vpop.f32.mrf.mxu0
  %v119 = vadd.f32 %v56, %v118
  %120 = vmatmul.bf16.gmra.mxu0 %v95
  %v121 = vpop.f32.mrf.mxu0
  %v122 = vadd.f32 %v56, %v121
  %v123 = vpop.f32.mrf.mxu0
  %v124 = vadd.f32 %v56, %v123
  %125 = vdwg.mxu0
  %vm126 = vcmp.ge.f32.partialorder %v107, 0.0
  %vm127 = vcmp.ge.f32.partialorder %v109, 0.0
  %vm128 = vcmp.ge.f32.partialorder %v112, 0.0
  %vm129 = vcmp.ge.f32.partialorder %v114, 0.0
  %vm130 = vcmp.ge.f32.partialorder %v117, 0.0
  %vm131 = vcmp.ge.f32.partialorder %v119, 0.0
  %vm132 = vcmp.ge.f32.partialorder %v122, 0.0
  %vm133 = vcmp.ge.f32.partialorder %v124, 0.0
  %v134 = vmul.f32 %v107, 0.01
  %v135 = vmul.f32 %v109, 0.01
  %v136 = vmul.f32 %v112, 0.01
  %v137 = vmul.f32 %v114, 0.01
  %v138 = vmul.f32 %v117, 0.01
  %v139 = vmul.f32 %v119, 0.01
  %v140 = vmul.f32 %v122, 0.01
  %v141 = vmul.f32 %v124, 0.01
  %v142 = vsel %vm126, %v107, %v134
  %v143 = vsel %vm127, %v109, %v135
  %v144 = vsel %vm128, %v112, %v136
  %v145 = vsel %vm129, %v114, %v137
  %v146 = vsel %vm130, %v117, %v138
  %v147 = vsel %vm131, %v119, %v139
  %v148 = vsel %vm132, %v122, %v140
  %v149 = vsel %vm133, %v124, %v141
  %v150 = vpack.c.bf16 %v143, %v142
  %v151 = vpack.c.bf16 %v145, %v144
  %v152 = vpack.c.bf16 %v147, %v146
  %v153 = vpack.c.bf16 %v149, %v148
  %v154 = vld [vmem:[%s4] sm:$0xf]
  %v155 = vld [vmem:[%s4 + $0x4] sm:$0xf]
  %v156 = vld [vmem:[%s4 + $0x8] sm:$0xf]
  %v157 = vld [vmem:[%s4 + $0xc] sm:$0xf]
  %v158 = vld [vmem:[%s5] sm:$0x1]
  %v160 = vperm.slane %v158, 0
  %v166 = vunpack.c.l.b16 %v154
  %v167 = vunpack.c.l.b16 %v155
  %v168 = vunpack.c.l.b16 %v156
  %v169 = vunpack.c.l.b16 %v157
  %v170 = vpack.c.b16 %v167, %v166
  %v171 = vpack.c.b16 %v169, %v168
  %vm174 = vcmask 261120
  %v176 = vsel %vm174, %v150, 0
  %v179 = vsel %vm174, %v151, 0
  %v182 = vsel %vm174, %v152, 0
  %v185 = vsel %vm174, %v153, 0
  %187 = vmatpush.bf16.msra.mxu0 0
  %188 = vmatpush.bf16.msra.mxu0 0
  %189 = vmatpush.bf16.msra.mxu0 0
  %190 = vmatpush.bf16.msra.mxu0 0
  %191 = vmatpush.bf16.msra.mxu0 0
  %192 = vmatpush.bf16.msra.mxu0 0
  %193 = vmatpush.bf16.msra.mxu0 %v171
  %194 = vmatpush.bf16.msra.mxu0 %v170
  %195 = vmatmul.bf16.gmra.mxu0 %v176
  %v196 = vpop.f32.mrf.mxu0
  %v197 = vadd.f32 %v160, %v196
  %v198 = vpop.f32.mrf.mxu0
  %v199 = vadd.f32 %v160, %v198
  %200 = vmatmul.bf16.gmra.mxu0 %v179
  %v201 = vpop.f32.mrf.mxu0
  %v202 = vadd.f32 %v160, %v201
  %v203 = vpop.f32.mrf.mxu0
  %v204 = vadd.f32 %v160, %v203
  %205 = vmatmul.bf16.gmra.mxu0 %v182
  %v206 = vpop.f32.mrf.mxu0
  %v207 = vadd.f32 %v160, %v206
  %v208 = vpop.f32.mrf.mxu0
  %v209 = vadd.f32 %v160, %v208
  %210 = vmatmul.bf16.gmra.mxu0 %v185
  %v211 = vpop.f32.mrf.mxu0
  %v212 = vadd.f32 %v160, %v211
  %v213 = vpop.f32.mrf.mxu0
  %v214 = vadd.f32 %v160, %v213
  %215 = vdwg.mxu0
  %vm216 = vcmask 785408
  %217 = vst.msk [vmem:[#allocation2] sm:$0xff] %vm216, %v197
  %218 = vst.msk [vmem:[#allocation2 + $0x8] sm:$0xff] %vm216, %v199
  %219 = vst.msk [vmem:[#allocation2 + $0x10] sm:$0xff] %vm216, %v202
  %220 = vst.msk [vmem:[#allocation2 + $0x18] sm:$0xff] %vm216, %v204
  %221 = vst.msk [vmem:[#allocation2 + $0x20] sm:$0xff] %vm216, %v207
  %222 = vst.msk [vmem:[#allocation2 + $0x28] sm:$0xff] %vm216, %v209
  %223 = vst.msk [vmem:[#allocation2 + $0x30] sm:$0xff] %vm216, %v212
  %224 = vst.msk [vmem:[#allocation2 + $0x38] sm:$0xff] %vm216, %v214
  %v225 = vld [vmem:[%s6] sm:$0xf]
  %v226 = vld [vmem:[%s6 + $0x4] sm:$0xf]
  %v227 = vld [vmem:[%s6 + $0x8] sm:$0xf]
  %v228 = vld [vmem:[%s6 + $0xc] sm:$0xf]
  %v229 = vld [vmem:[%s7] sm:$0x1]
  %v230 = vld [vmem:[%s1] sm:$0xff]
  %v231 = vpack.c.bf16 %v230, %v230
  %v236 = vunpack.c.l.b16 %v225
  %v237 = vunpack.c.l.b16 %v226
  %v238 = vunpack.c.l.b16 %v227
  %v239 = vunpack.c.l.b16 %v228
  %v240 = vpack.c.b16 %v237, %v236
  %v241 = vpack.c.b16 %v239, %v238
  %v245 = vsel %vm174, %v231, 0
  %247 = vmatpush.bf16.msra.mxu0 0
  %248 = vmatpush.bf16.msra.mxu0 0
  %249 = vmatpush.bf16.msra.mxu0 0
  %250 = vmatpush.bf16.msra.mxu0 0
  %251 = vmatpush.bf16.msra.mxu0 0
  %252 = vmatpush.bf16.msra.mxu0 0
  %253 = vmatpush.bf16.msra.mxu0 %v241
  %254 = vmatpush.bf16.msra.mxu0 %v240
  %255 = vmatmul.bf16.gmra.mxu0 %v245
  %v256 = vpop.f32.mrf.mxu0
  %v257 = vadd.f32 0.0, %v256
  %v258 = vpop.f32.mrf.mxu0
  %259 = vdwg.mxu0
  %v260 = vld [vmem:[#allocation2] sm:$0xff]
  %v261 = vadd.f32 %v260, %v257
  %v262 = vxor.u32 %v261, 2147483648
  %v263 = vmul.f32 %v262, 1.442695
  %v264 = vpow.pop %v263
  %v265 = vadd.f32 %v264, 1.0
  %v266 = vrcp.pop %v265
  %v267 = vmul.f32 %v265, %v266
  %v268 = vsub.f32 1.0, %v267
  %v269 = vmul.f32 %v266, %v268
  %v270 = vadd.f32 %v266, %v269
  %vm271 = vweird.f32 %v265
  %vm272 = vweird.f32 %v266
  %vm273 = vmor %vm271, %vm272
  %v274 = vsel %vm273, %v266, %v270
  %v275 = vand.u32 2147483647, %v265
  %vm276 = vcmp.eq.f32.partialorder %v275, 8.507059e+37
  %v277 = vand.u32 %v265, 2147483648
  %v278 = vor.u32 1.1754944e-38, %v277
  %v279 = vsel %vm276, %v278, %v274
  %v280 = vmul.f32 1.0, %v279
  %v282 = vperm.slane %v229, 0
  %283 = vrot.lane.b32.xlu0 %v282, 64
  %v284 = vpop.permute.xlu0 %283
  %v286 = vadd.f32 %v257, %v284
  %288 = vrot.lane.b32.xlu0 %v286, 64
  %v289 = vpop.permute.xlu0 %288
  %v291 = vmul.f32 %v280, %v289
  %293 = vrot.lane.b32.xlu0 %v291, 64
  %v294 = vpop.permute.xlu0 %293
  %v296 = vadd.f32 %v260, %v294
  %v297 = vtanh.pop %v296
  %v298 = vsub.f32 1.0, %v280
  %300 = vrot.lane.b32.xlu0 %v297, 96
  %v301 = vpop.permute.xlu0 %300
  %v303 = vmul.f32 %v298, %v301
  %305 = vrot.lane.b32.xlu0 %v230, 32
  %v306 = vpop.permute.xlu0 %305
  %v308 = vmul.f32 %v280, %v306
  %v309 = vadd.f32 %v303, %v308
  %v310 = vpack.c.bf16 %v309, %v309
  %312 = vrot.lane.b32.xlu0 %v310, 96
  %v313 = vpop.permute.xlu0 %312
  %vm315 = vcmask 257024
  %316 = vst.msk [vmem:[#allocation3] sm:$0xf] %vm315, %v313
  %v317 = vunpack.c.l.b16 %v310
  %v318 = vpack.c.b16 %v317, %v317
  %319 = vrot.lane.b32.xlu0 %v318, 96
  %v320 = vpop.permute.xlu0 %319
  %v322 = vsel %vm174, %v320, 0
  %324 = vmatpush.bf16.msra.mxu0 0
  %325 = vmatpush.bf16.msra.mxu0 0
  %326 = vmatpush.bf16.msra.mxu0 0
  %327 = vmatpush.bf16.msra.mxu0 0
  %328 = vmatpush.bf16.msra.mxu0 0
  %329 = vmatpush.bf16.msra.mxu0 0
  %330 = vmatpush.bf16.msra.mxu0 %v241
  %331 = vmatpush.bf16.msra.mxu0 %v240
  %332 = vmatmul.bf16.gmra.mxu0 %v322
  %v333 = vpop.f32.mrf.mxu0
  %v334 = vadd.f32 0.0, %v333
  %v335 = vpop.f32.mrf.mxu0
  %336 = vdwg.mxu0
  %s337 = scalar_lea.vmem [#allocation2], 8
  %v338 = vld [vmem:[%s337] sm:$0xff]
  %v339 = vadd.f32 %v338, %v334
  %v340 = vxor.u32 %v339, 2147483648
  %v341 = vmul.f32 %v340, 1.442695
  %v342 = vpow.pop %v341
  %v343 = vadd.f32 %v342, 1.0
  %v344 = vrcp.pop %v343
  %v345 = vmul.f32 %v343, %v344
  %v346 = vsub.f32 1.0, %v345
  %v347 = vmul.f32 %v344, %v346
  %v348 = vadd.f32 %v344, %v347
  %vm349 = vweird.f32 %v343
  %vm350 = vweird.f32 %v344
  %vm351 = vmor %vm349, %vm350
  %v352 = vsel %vm351, %v344, %v348
  %v353 = vand.u32 2147483647, %v343
  %vm354 = vcmp.eq.f32.partialorder %v353, 8.507059e+37
  %v355 = vand.u32 %v343, 2147483648
  %v356 = vor.u32 1.1754944e-38, %v355
  %v357 = vsel %vm354, %v356, %v352
  %v358 = vmul.f32 1.0, %v357
  %v359 = vadd.f32 %v334, %v284
  %361 = vrot.lane.b32.xlu0 %v359, 64
  %v362 = vpop.permute.xlu0 %361
  %v364 = vmul.f32 %v358, %v362
  %366 = vrot.lane.b32.xlu0 %v364, 64
  %v367 = vpop.permute.xlu0 %366
  %v369 = vadd.f32 %v338, %v367
  %v370 = vtanh.pop %v369
  %v371 = vsub.f32 1.0, %v358
  %373 = vrot.lane.b32.xlu0 %v370, 96
  %v374 = vpop.permute.xlu0 %373
  %v376 = vmul.f32 %v371, %v374
  %v377 = vmul.f32 %v358, %v309
  %v378 = vadd.f32 %v376, %v377
  %v379 = vpack.c.bf16 %v378, %v378
  %381 = vrot.lane.b32.xlu0 %v379, 96
  %v382 = vpop.permute.xlu0 %381
  %s384 = scalar_lea.vmem [#allocation3], 4
  %385 = vst.msk [vmem:[%s384] sm:$0xf] %vm315, %v382
  %v386 = vunpack.c.l.b16 %v379
  %v387 = vpack.c.b16 %v386, %v386
  %388 = vrot.lane.b32.xlu0 %v387, 96
  %v389 = vpop.permute.xlu0 %388
  %v391 = vsel %vm174, %v389, 0
  %393 = vmatpush.bf16.msra.mxu0 0
  %394 = vmatpush.bf16.msra.mxu0 0
  %395 = vmatpush.bf16.msra.mxu0 0
  %396 = vmatpush.bf16.msra.mxu0 0
  %397 = vmatpush.bf16.msra.mxu0 0
  %398 = vmatpush.bf16.msra.mxu0 0
  %399 = vmatpush.bf16.msra.mxu0 %v241
  %400 = vmatpush.bf16.msra.mxu0 %v240
  %401 = vmatmul.bf16.gmra.mxu0 %v391
  %v402 = vpop.f32.mrf.mxu0
  %v403 = vadd.f32 0.0, %v402
  %v404 = vpop.f32.mrf.mxu0
  %405 = vdwg.mxu0
  %s406 = scalar_lea.vmem [#allocation2], 16
  %v407 = vld [vmem:[%s406] sm:$0xff]
  %v408 = vadd.f32 %v407, %v403
  %v409 = vxor.u32 %v408, 2147483648
  %v410 = vmul.f32 %v409, 1.442695
  %v411 = vpow.pop %v410
  %v412 = vadd.f32 %v411, 1.0
  %v413 = vrcp.pop %v412
  %v414 = vmul.f32 %v412, %v413
  %v415 = vsub.f32 1.0, %v414
  %v416 = vmul.f32 %v413, %v415
  %v417 = vadd.f32 %v413, %v416
  %vm418 = vweird.f32 %v412
  %vm419 = vweird.f32 %v413
  %vm420 = vmor %vm418, %vm419
  %v421 = vsel %vm420, %v413, %v417
  %v422 = vand.u32 2147483647, %v412
  %vm423 = vcmp.eq.f32.partialorder %v422, 8.507059e+37
  %v424 = vand.u32 %v412, 2147483648
  %v425 = vor.u32 1.1754944e-38, %v424
  %v426 = vsel %vm423, %v425, %v421
  %v427 = vmul.f32 1.0, %v426
  %v428 = vadd.f32 %v403, %v284
  %430 = vrot.lane.b32.xlu0 %v428, 64
  %v431 = vpop.permute.xlu0 %430
  %v433 = vmul.f32 %v427, %v431
  %435 = vrot.lane.b32.xlu0 %v433, 64
  %v436 = vpop.permute.xlu0 %435
  %v438 = vadd.f32 %v407, %v436
  %v439 = vtanh.pop %v438
  %v440 = vsub.f32 1.0, %v427
  %442 = vrot.lane.b32.xlu0 %v439, 96
  %v443 = vpop.permute.xlu0 %442
  %v445 = vmul.f32 %v440, %v443
  %v446 = vmul.f32 %v427, %v378
  %v447 = vadd.f32 %v445, %v446
  %v448 = vpack.c.bf16 %v447, %v447
  %450 = vrot.lane.b32.xlu0 %v448, 96
  %v451 = vpop.permute.xlu0 %450
  %s453 = scalar_lea.vmem [#allocation3], 8
  %454 = vst.msk [vmem:[%s453] sm:$0xf] %vm315, %v451
  %v455 = vunpack.c.l.b16 %v448
  %v456 = vpack.c.b16 %v455, %v455
  %457 = vrot.lane.b32.xlu0 %v456, 96
  %v458 = vpop.permute.xlu0 %457
  %v460 = vsel %vm174, %v458, 0
  %462 = vmatpush.bf16.msra.mxu0 0
  %463 = vmatpush.bf16.msra.mxu0 0
  %464 = vmatpush.bf16.msra.mxu0 0
  %465 = vmatpush.bf16.msra.mxu0 0
  %466 = vmatpush.bf16.msra.mxu0 0
  %467 = vmatpush.bf16.msra.mxu0 0
  %468 = vmatpush.bf16.msra.mxu0 %v241
  %469 = vmatpush.bf16.msra.mxu0 %v240
  %470 = vmatmul.bf16.gmra.mxu0 %v460
  %v471 = vpop.f32.mrf.mxu0
  %v472 = vadd.f32 0.0, %v471
  %v473 = vpop.f32.mrf.mxu0
  %474 = vdwg.mxu0
  %s475 = scalar_lea.vmem [#allocation2], 24
  %v476 = vld [vmem:[%s475] sm:$0xff]
  %v477 = vadd.f32 %v476, %v472
  %v478 = vxor.u32 %v477, 2147483648
  %v479 = vmul.f32 %v478, 1.442695
  %v480 = vpow.pop %v479
  %v481 = vadd.f32 %v480, 1.0
  %v482 = vrcp.pop %v481
  %v483 = vmul.f32 %v481, %v482
  %v484 = vsub.f32 1.0, %v483
  %v485 = vmul.f32 %v482, %v484
  %v486 = vadd.f32 %v482, %v485
  %vm487 = vweird.f32 %v481
  %vm488 = vweird.f32 %v482
  %vm489 = vmor %vm487, %vm488
  %v490 = vsel %vm489, %v482, %v486
  %v491 = vand.u32 2147483647, %v481
  %vm492 = vcmp.eq.f32.partialorder %v491, 8.507059e+37
  %v493 = vand.u32 %v481, 2147483648
  %v494 = vor.u32 1.1754944e-38, %v493
  %v495 = vsel %vm492, %v494, %v490
  %v496 = vmul.f32 1.0, %v495
  %v497 = vadd.f32 %v472, %v284
  %499 = vrot.lane.b32.xlu0 %v497, 64
  %v500 = vpop.permute.xlu0 %499
  %v502 = vmul.f32 %v496, %v500
  %504 = vrot.lane.b32.xlu0 %v502, 64
  %v505 = vpop.permute.xlu0 %504
  %v507 = vadd.f32 %v476, %v505
  %v508 = vtanh.pop %v507
  %v509 = vsub.f32 1.0, %v496
  %511 = vrot.lane.b32.xlu0 %v508, 96
  %v512 = vpop.permute.xlu0 %511
  %v514 = vmul.f32 %v509, %v512
  %v515 = vmul.f32 %v496, %v447
  %v516 = vadd.f32 %v514, %v515
  %v517 = vpack.c.bf16 %v516, %v516
  %519 = vrot.lane.b32.xlu0 %v517, 96
  %v520 = vpop.permute.xlu0 %519
  %s522 = scalar_lea.vmem [#allocation3], 12
  %523 = vst.msk [vmem:[%s522] sm:$0xf] %vm315, %v520
  %v524 = vunpack.c.l.b16 %v517
  %v525 = vpack.c.b16 %v524, %v524
  %526 = vrot.lane.b32.xlu0 %v525, 96
  %v527 = vpop.permute.xlu0 %526
  %v529 = vsel %vm174, %v527, 0
  %531 = vmatpush.bf16.msra.mxu0 0
  %532 = vmatpush.bf16.msra.mxu0 0
  %533 = vmatpush.bf16.msra.mxu0 0
  %534 = vmatpush.bf16.msra.mxu0 0
  %535 = vmatpush.bf16.msra.mxu0 0
  %536 = vmatpush.bf16.msra.mxu0 0
  %537 = vmatpush.bf16.msra.mxu0 %v241
  %538 = vmatpush.bf16.msra.mxu0 %v240
  %539 = vmatmul.bf16.gmra.mxu0 %v529
  %v540 = vpop.f32.mrf.mxu0
  %v541 = vadd.f32 0.0, %v540
  %v542 = vpop.f32.mrf.mxu0
  %543 = vdwg.mxu0
  %s544 = scalar_lea.vmem [#allocation2], 32
  %v545 = vld [vmem:[%s544] sm:$0xff]
  %v546 = vadd.f32 %v545, %v541
  %v547 = vxor.u32 %v546, 2147483648
  %v548 = vmul.f32 %v547, 1.442695
  %v549 = vpow.pop %v548
  %v550 = vadd.f32 %v549, 1.0
  %v551 = vrcp.pop %v550
  %v552 = vmul.f32 %v550, %v551
  %v553 = vsub.f32 1.0, %v552
  %v554 = vmul.f32 %v551, %v553
  %v555 = vadd.f32 %v551, %v554
  %vm556 = vweird.f32 %v550
  %vm557 = vweird.f32 %v551
  %vm558 = vmor %vm556, %vm557
  %v559 = vsel %vm558, %v551, %v555
  %v560 = vand.u32 2147483647, %v550
  %vm561 = vcmp.eq.f32.partialorder %v560, 8.507059e+37
  %v562 = vand.u32 %v550, 2147483648
  %v563 = vor.u32 1.1754944e-38, %v562
  %v564 = vsel %vm561, %v563, %v559
  %v565 = vmul.f32 1.0, %v564
  %v566 = vadd.f32 %v541, %v284
  %568 = vrot.lane.b32.xlu0 %v566, 64
  %v569 = vpop.permute.xlu0 %568
  %v571 = vmul.f32 %v565, %v569
  %573 = vrot.lane.b32.xlu0 %v571, 64
  %v574 = vpop.permute.xlu0 %573
  %v576 = vadd.f32 %v545, %v574
  %v577 = vtanh.pop %v576
  %v578 = vsub.f32 1.0, %v565
  %580 = vrot.lane.b32.xlu0 %v577, 96
  %v581 = vpop.permute.xlu0 %580
  %v583 = vmul.f32 %v578, %v581
  %v584 = vmul.f32 %v565, %v516
  %v585 = vadd.f32 %v583, %v584
  %v586 = vpack.c.bf16 %v585, %v585
  %588 = vrot.lane.b32.xlu0 %v586, 96
  %v589 = vpop.permute.xlu0 %588
  %s591 = scalar_lea.vmem [#allocation3], 16
  %592 = vst.msk [vmem:[%s591] sm:$0xf] %vm315, %v589
  %v593 = vunpack.c.l.b16 %v586
  %v594 = vpack.c.b16 %v593, %v593
  %595 = vrot.lane.b32.xlu0 %v594, 96
  %v596 = vpop.permute.xlu0 %595
  %v598 = vsel %vm174, %v596, 0
  %600 = vmatpush.bf16.msra.mxu0 0
  %601 = vmatpush.bf16.msra.mxu0 0
  %602 = vmatpush.bf16.msra.mxu0 0
  %603 = vmatpush.bf16.msra.mxu0 0
  %604 = vmatpush.bf16.msra.mxu0 0
  %605 = vmatpush.bf16.msra.mxu0 0
  %606 = vmatpush.bf16.msra.mxu0 %v241
  %607 = vmatpush.bf16.msra.mxu0 %v240
  %608 = vmatmul.bf16.gmra.mxu0 %v598
  %v609 = vpop.f32.mrf.mxu0
  %v610 = vadd.f32 0.0, %v609
  %v611 = vpop.f32.mrf.mxu0
  %612 = vdwg.mxu0
  %s613 = scalar_lea.vmem [#allocation2], 40
  %v614 = vld [vmem:[%s613] sm:$0xff]
  %v615 = vadd.f32 %v614, %v610
  %v616 = vxor.u32 %v615, 2147483648
  %v617 = vmul.f32 %v616, 1.442695
  %v618 = vpow.pop %v617
  %v619 = vadd.f32 %v618, 1.0
  %v620 = vrcp.pop %v619
  %v621 = vmul.f32 %v619, %v620
  %v622 = vsub.f32 1.0, %v621
  %v623 = vmul.f32 %v620, %v622
  %v624 = vadd.f32 %v620, %v623
  %vm625 = vweird.f32 %v619
  %vm626 = vweird.f32 %v620
  %vm627 = vmor %vm625, %vm626
  %v628 = vsel %vm627, %v620, %v624
  %v629 = vand.u32 2147483647, %v619
  %vm630 = vcmp.eq.f32.partialorder %v629, 8.507059e+37
  %v631 = vand.u32 %v619, 2147483648
  %v632 = vor.u32 1.1754944e-38, %v631
  %v633 = vsel %vm630, %v632, %v628
  %v634 = vmul.f32 1.0, %v633
  %v635 = vadd.f32 %v610, %v284
  %637 = vrot.lane.b32.xlu0 %v635, 64
  %v638 = vpop.permute.xlu0 %637
  %v640 = vmul.f32 %v634, %v638
  %642 = vrot.lane.b32.xlu0 %v640, 64
  %v643 = vpop.permute.xlu0 %642
  %v645 = vadd.f32 %v614, %v643
  %v646 = vtanh.pop %v645
  %v647 = vsub.f32 1.0, %v634
  %649 = vrot.lane.b32.xlu0 %v646, 96
  %v650 = vpop.permute.xlu0 %649
  %v652 = vmul.f32 %v647, %v650
  %v653 = vmul.f32 %v634, %v585
  %v654 = vadd.f32 %v652, %v653
  %v655 = vpack.c.bf16 %v654, %v654
  %657 = vrot.lane.b32.xlu0 %v655, 96
  %v658 = vpop.permute.xlu0 %657
  %s660 = scalar_lea.vmem [#allocation3], 20
  %661 = vst.msk [vmem:[%s660] sm:$0xf] %vm315, %v658
  %v662 = vunpack.c.l.b16 %v655
  %v663 = vpack.c.b16 %v662, %v662
  %664 = vrot.lane.b32.xlu0 %v663, 96
  %v665 = vpop.permute.xlu0 %664
  %v667 = vsel %vm174, %v665, 0
  %669 = vmatpush.bf16.msra.mxu0 0
  %670 = vmatpush.bf16.msra.mxu0 0
  %671 = vmatpush.bf16.msra.mxu0 0
  %672 = vmatpush.bf16.msra.mxu0 0
  %673 = vmatpush.bf16.msra.mxu0 0
  %674 = vmatpush.bf16.msra.mxu0 0
  %675 = vmatpush.bf16.msra.mxu0 %v241
  %676 = vmatpush.bf16.msra.mxu0 %v240
  %677 = vmatmul.bf16.gmra.mxu0 %v667
  %v678 = vpop.f32.mrf.mxu0
  %v679 = vadd.f32 0.0, %v678
  %v680 = vpop.f32.mrf.mxu0
  %681 = vdwg.mxu0
  %s682 = scalar_lea.vmem [#allocation2], 48
  %v683 = vld [vmem:[%s682] sm:$0xff]
  %v684 = vadd.f32 %v683, %v679
  %v685 = vxor.u32 %v684, 2147483648
  %v686 = vmul.f32 %v685, 1.442695
  %v687 = vpow.pop %v686
  %v688 = vadd.f32 %v687, 1.0
  %v689 = vrcp.pop %v688
  %v690 = vmul.f32 %v688, %v689
  %v691 = vsub.f32 1.0, %v690
  %v692 = vmul.f32 %v689, %v691
  %v693 = vadd.f32 %v689, %v692
  %vm694 = vweird.f32 %v688
  %vm695 = vweird.f32 %v689
  %vm696 = vmor %vm694, %vm695
  %v697 = vsel %vm696, %v689, %v693
  %v698 = vand.u32 2147483647, %v688
  %vm699 = vcmp.eq.f32.partialorder %v698, 8.507059e+37
  %v700 = vand.u32 %v688, 2147483648
  %v701 = vor.u32 1.1754944e-38, %v700
  %v702 = vsel %vm699, %v701, %v697
  %v703 = vmul.f32 1.0, %v702
  %v704 = vadd.f32 %v679, %v284
  %706 = vrot.lane.b32.xlu0 %v704, 64
  %v707 = vpop.permute.xlu0 %706
  %v709 = vmul.f32 %v703, %v707
  %711 = vrot.lane.b32.xlu0 %v709, 64
  %v712 = vpop.permute.xlu0 %711
  %v714 = vadd.f32 %v683, %v712
  %v715 = vtanh.pop %v714
  %v716 = vsub.f32 1.0, %v703
  %718 = vrot.lane.b32.xlu0 %v715, 96
  %v719 = vpop.permute.xlu0 %718
  %v721 = vmul.f32 %v716, %v719
  %v722 = vmul.f32 %v703, %v654
  %v723 = vadd.f32 %v721, %v722
  %v724 = vpack.c.bf16 %v723, %v723
  %726 = vrot.lane.b32.xlu0 %v724, 96
  %v727 = vpop.permute.xlu0 %726
  %s729 = scalar_lea.vmem [#allocation3], 24
  %730 = vst.msk [vmem:[%s729] sm:$0xf] %vm315, %v727
  %v731 = vunpack.c.l.b16 %v724
  %v732 = vpack.c.b16 %v731, %v731
  %733 = vrot.lane.b32.xlu0 %v732, 96
  %v734 = vpop.permute.xlu0 %733
  %v736 = vsel %vm174, %v734, 0
  %738 = vmatpush.bf16.msra.mxu0 0
  %739 = vmatpush.bf16.msra.mxu0 0
  %740 = vmatpush.bf16.msra.mxu0 0
  %741 = vmatpush.bf16.msra.mxu0 0
  %742 = vmatpush.bf16.msra.mxu0 0
  %743 = vmatpush.bf16.msra.mxu0 0
  %744 = vmatpush.bf16.msra.mxu0 %v241
  %745 = vmatpush.bf16.msra.mxu0 %v240
  %746 = vmatmul.bf16.gmra.mxu0 %v736
  %v747 = vpop.f32.mrf.mxu0
  %v748 = vadd.f32 0.0, %v747
  %v749 = vpop.f32.mrf.mxu0
  %750 = vdwg.mxu0
  %s751 = scalar_lea.vmem [#allocation2], 56
  %v752 = vld [vmem:[%s751] sm:$0xff]
  %v753 = vadd.f32 %v752, %v748
  %v754 = vxor.u32 %v753, 2147483648
  %v755 = vmul.f32 %v754, 1.442695
  %v756 = vpow.pop %v755
  %v757 = vadd.f32 %v756, 1.0
  %v758 = vrcp.pop %v757
  %v759 = vmul.f32 %v757, %v758
  %v760 = vsub.f32 1.0, %v759
  %v761 = vmul.f32 %v758, %v760
  %v762 = vadd.f32 %v758, %v761
  %vm763 = vweird.f32 %v757
  %vm764 = vweird.f32 %v758
  %vm765 = vmor %vm763, %vm764
  %v766 = vsel %vm765, %v758, %v762
  %v767 = vand.u32 2147483647, %v757
  %vm768 = vcmp.eq.f32.partialorder %v767, 8.507059e+37
  %v769 = vand.u32 %v757, 2147483648
  %v770 = vor.u32 1.1754944e-38, %v769
  %v771 = vsel %vm768, %v770, %v766
  %v772 = vmul.f32 1.0, %v771
  %v773 = vadd.f32 %v748, %v284
  %775 = vrot.lane.b32.xlu0 %v773, 64
  %v776 = vpop.permute.xlu0 %775
  %v778 = vmul.f32 %v772, %v776
  %780 = vrot.lane.b32.xlu0 %v778, 64
  %v781 = vpop.permute.xlu0 %780
  %v783 = vadd.f32 %v752, %v781
  %v784 = vtanh.pop %v783
  %v785 = vsub.f32 1.0, %v772
  %787 = vrot.lane.b32.xlu0 %v784, 96
  %v788 = vpop.permute.xlu0 %787
  %v790 = vmul.f32 %v785, %v788
  %v791 = vmul.f32 %v772, %v723
  %v792 = vadd.f32 %v790, %v791
  %v793 = vpack.c.bf16 %v792, %v792
  %795 = vrot.lane.b32.xlu0 %v793, 96
  %v796 = vpop.permute.xlu0 %795
  %s798 = scalar_lea.vmem [#allocation3], 28
  %799 = vst.msk [vmem:[%s798] sm:$0xf] %vm315, %v796
  %v800 = vld [vmem:[#allocation3] sm:$0xf]
  %v801 = vld [vmem:[#allocation3 + $0x4] sm:$0xf]
  %v802 = vld [vmem:[#allocation3 + $0x8] sm:$0xf]
  %v803 = vld [vmem:[#allocation3 + $0xc] sm:$0xf]
  %v804 = vld [vmem:[#allocation3 + $0x10] sm:$0xf]
  %v805 = vld [vmem:[#allocation3 + $0x14] sm:$0xf]
  %v806 = vld [vmem:[#allocation3 + $0x18] sm:$0xf]
  %v807 = vld [vmem:[#allocation3 + $0x1c] sm:$0xf]
  %v808 = vld [vmem:[%s8] sm:$0xf]
  %v809 = vld [vmem:[%s8 + $0x4] sm:$0xf]
  %v810 = vld [vmem:[%s8 + $0x8] sm:$0xf]
  %v811 = vld [vmem:[%s8 + $0xc] sm:$0xf]
  %v812 = vld [vmem:[%s9] sm:$0x1]
  %v814 = vperm.slane %v812, 0
  %v824 = vunpack.c.l.b16 %v800
  %v825 = vunpack.c.l.b16 %v801
  %v826 = vunpack.c.l.b16 %v802
  %v827 = vunpack.c.l.b16 %v803
  %v828 = vunpack.c.l.b16 %v804
  %v829 = vunpack.c.l.b16 %v805
  %v830 = vunpack.c.l.b16 %v806
  %v831 = vunpack.c.l.b16 %v807
  %v832 = vpack.c.b16 %v825, %v824
  %v833 = vpack.c.b16 %v827, %v826
  %v834 = vpack.c.b16 %v829, %v828
  %v835 = vpack.c.b16 %v831, %v830
  %v840 = vunpack.c.l.b16 %v808
  %v841 = vunpack.c.l.b16 %v809
  %v842 = vunpack.c.l.b16 %v810
  %v843 = vunpack.c.l.b16 %v811
  %v844 = vpack.c.b16 %v841, %v840
  %v845 = vpack.c.b16 %v843, %v842
  %v849 = vsel %vm174, %v832, 0
  %v852 = vsel %vm174, %v833, 0
  %v855 = vsel %vm174, %v834, 0
  %v858 = vsel %vm174, %v835, 0
  %860 = vmatpush.bf16.msra.mxu0 0
  %861 = vmatpush.bf16.msra.mxu0 0
  %862 = vmatpush.bf16.msra.mxu0 0
  %863 = vmatpush.bf16.msra.mxu0 0
  %864 = vmatpush.bf16.msra.mxu0 0
  %865 = vmatpush.bf16.msra.mxu0 0
  %866 = vmatpush.bf16.msra.mxu0 %v845
  %867 = vmatpush.bf16.msra.mxu0 %v844
  %868 = vmatmul.bf16.gmra.mxu0 %v849
  %v869 = vpop.f32.mrf.mxu0
  %v870 = vadd.f32 %v814, %v869
  %v871 = vpop.f32.mrf.mxu0
  %v872 = vadd.f32 %v814, %v871
  %873 = vmatmul.bf16.gmra.mxu0 %v852
  %v874 = vpop.f32.mrf.mxu0
  %v875 = vadd.f32 %v814, %v874
  %v876 = vpop.f32.mrf.mxu0
  %v877 = vadd.f32 %v814, %v876
  %878 = vmatmul.bf16.gmra.mxu0 %v855
  %v879 = vpop.f32.mrf.mxu0
  %v880 = vadd.f32 %v814, %v879
  %v881 = vpop.f32.mrf.mxu0
  %v882 = vadd.f32 %v814, %v881
  %883 = vmatmul.bf16.gmra.mxu0 %v858
  %v884 = vpop.f32.mrf.mxu0
  %v885 = vadd.f32 %v814, %v884
  %v886 = vpop.f32.mrf.mxu0
  %v887 = vadd.f32 %v814, %v886
  %888 = vdwg.mxu0
  %vm889 = vcmp.ge.f32.partialorder %v870, 0.0
  %vm890 = vcmp.ge.f32.partialorder %v872, 0.0
  %vm891 = vcmp.ge.f32.partialorder %v875, 0.0
  %vm892 = vcmp.ge.f32.partialorder %v877, 0.0
  %vm893 = vcmp.ge.f32.partialorder %v880, 0.0
  %vm894 = vcmp.ge.f32.partialorder %v882, 0.0
  %vm895 = vcmp.ge.f32.partialorder %v885, 0.0
  %vm896 = vcmp.ge.f32.partialorder %v887, 0.0
  %v897 = vmul.f32 %v870, 0.01
  %v898 = vmul.f32 %v872, 0.01
  %v899 = vmul.f32 %v875, 0.01
  %v900 = vmul.f32 %v877, 0.01
  %v901 = vmul.f32 %v880, 0.01
  %v902 = vmul.f32 %v882, 0.01
  %v903 = vmul.f32 %v885, 0.01
  %v904 = vmul.f32 %v887, 0.01
  %v905 = vsel %vm889, %v870, %v897
  %v906 = vsel %vm890, %v872, %v898
  %v907 = vsel %vm891, %v875, %v899
  %v908 = vsel %vm892, %v877, %v900
  %v909 = vsel %vm893, %v880, %v901
  %v910 = vsel %vm894, %v882, %v902
  %v911 = vsel %vm895, %v885, %v903
  %v912 = vsel %vm896, %v887, %v904
  %v913 = vpack.c.bf16 %v906, %v905
  %v914 = vpack.c.bf16 %v908, %v907
  %v915 = vpack.c.bf16 %v910, %v909
  %v916 = vpack.c.bf16 %v912, %v911
  %v917 = vld [vmem:[%s10] sm:$0xf]
  %v918 = vld [vmem:[%s10 + $0x4] sm:$0xf]
  %v919 = vld [vmem:[%s10 + $0x8] sm:$0xf]
  %v920 = vld [vmem:[%s10 + $0xc] sm:$0xf]
  %v921 = vld [vmem:[%s11] sm:$0x1]
  %v923 = vperm.slane %v921, 0
  %v929 = vunpack.c.l.b16 %v917
  %v930 = vunpack.c.l.b16 %v918
  %v931 = vunpack.c.l.b16 %v919
  %v932 = vunpack.c.l.b16 %v920
  %v933 = vpack.c.b16 %v930, %v929
  %v934 = vpack.c.b16 %v932, %v931
  %v938 = vsel %vm174, %v913, 0
  %v941 = vsel %vm174, %v914, 0
  %v944 = vsel %vm174, %v915, 0
  %v947 = vsel %vm174, %v916, 0
  %949 = vmatpush.bf16.msra.mxu0 0
  %950 = vmatpush.bf16.msra.mxu0 0
  %951 = vmatpush.bf16.msra.mxu0 0
  %952 = vmatpush.bf16.msra.mxu0 0
  %953 = vmatpush.bf16.msra.mxu0 0
  %954 = vmatpush.bf16.msra.mxu0 0
  %955 = vmatpush.bf16.msra.mxu0 %v934
  %956 = vmatpush.bf16.msra.mxu0 %v933
  %957 = vmatmul.bf16.gmra.mxu0 %v938
  %v958 = vpop.f32.mrf.mxu0
  %v959 = vadd.f32 %v923, %v958
  %v960 = vpop.f32.mrf.mxu0
  %v961 = vadd.f32 %v923, %v960
  %962 = vmatmul.bf16.gmra.mxu0 %v941
  %v963 = vpop.f32.mrf.mxu0
  %v964 = vadd.f32 %v923, %v963
  %v965 = vpop.f32.mrf.mxu0
  %v966 = vadd.f32 %v923, %v965
  %967 = vmatmul.bf16.gmra.mxu0 %v944
  %v968 = vpop.f32.mrf.mxu0
  %v969 = vadd.f32 %v923, %v968
  %v970 = vpop.f32.mrf.mxu0
  %v971 = vadd.f32 %v923, %v970
  %972 = vmatmul.bf16.gmra.mxu0 %v947
  %v973 = vpop.f32.mrf.mxu0
  %v974 = vadd.f32 %v923, %v973
  %v975 = vpop.f32.mrf.mxu0
  %v976 = vadd.f32 %v923, %v975
  %977 = vdwg.mxu0
  %978 = vst [vmem:[%s12] sm:$0xff] %v959
  %979 = vst [vmem:[%s12 + $0x8] sm:$0xff] %v961
  %980 = vst [vmem:[%s12 + $0x10] sm:$0xff] %v964
  %981 = vst [vmem:[%s12 + $0x18] sm:$0xff] %v966
  %982 = vst [vmem:[%s12 + $0x20] sm:$0xff] %v969
  %983 = vst [vmem:[%s12 + $0x28] sm:$0xff] %v971
  %984 = vst [vmem:[%s12 + $0x30] sm:$0xff] %v974
  %985 = vst [vmem:[%s12 + $0x38] sm:$0xff] %v976
  %987 = vrot.lane.b32.xlu0 %v792, 96
  %v988 = vpop.permute.xlu0 %987
  %990 = vst.msk [vmem:[%s13] sm:$0xff] %vm174, %v988
  // Predicated region
  $region50: #{rq_forward.1} parent=0 // pred_check
    _
  $region51: #{rq_forward.1} parent=0 // pred_check_branch
    %992 = sbr.rel (0) target = $region53
  $region52: #{rq_forward.1} parent=0 // pred_region
    _
  $region53: #{rq_forward.1} parent=0 // pred_fallthru
    _
  // Predicated region
  $region54: #{rq_forward.1} parent=0 // pred_check
    _
  $region55: #{rq_forward.1} parent=0 // pred_check_branch
    %994 = sbr.rel (0) target = $region57
  $region56: #{rq_forward.1} parent=0 // pred_region
    _
  $region57: #{rq_forward.1} parent=0 // pred_fallthru
    _
  // Predicated region
  $region58: #{rq_forward.1} parent=0 // pred_check
    _
  $region59: #{rq_forward.1} parent=0 // pred_check_branch
    %996 = sbr.rel (0) target = $region61
  $region60: #{rq_forward.1} parent=0 // pred_region
    _
  $region61: #{rq_forward.1} parent=0 // pred_fallthru
    _
  // Predicated region
  $region62: #{rq_forward.1} parent=0 // pred_check
    _
  $region63: #{rq_forward.1} parent=0 // pred_check_branch
    %998 = sbr.rel (0) target = $region65
  $region64: #{rq_forward.1} parent=0 // pred_region
    _
  $region65: #{rq_forward.1} parent=0 // pred_fallthru
    _

</llo_original>
